<compile_context>
chip_gen: v7x
topology: tpu7x:2x2x1
jax: 0.10.0
libtpu: 0.0.40
codegen_flags: <defaults>
</compile_context>

<pallas_src>
from functools import partial

import jax
import jax.numpy as jnp
from jax.experimental import pallas as pl
from jax.experimental.pallas import tpu as pltpu


def _masked_attention_kernel(x_ref, wqkv_ref, wproj_ref, bproj_ref, mask_ref,
                             o_ref, ctx_ref, *, num_heads, scale,
                             masked_softmax_bias):
    # x_ref:    (BT, N, C)   input tile (BT batch elements)
    # wqkv_ref: (C, 3C)      bf16, pre-transposed (y = x @ Wqkv^T)
    # wproj_ref:(C, C)       bf16, pre-transposed
    # bproj_ref:(1, C)       f32
    # mask_ref: (BT, 1, N)   f32, 1.0 == "mask this key"
    # o_ref:    (BT, N, C)
    # ctx_ref:  (BT*N, C)    bf16 VMEM scratch for the concatenated head context
    bt, n, c = x_ref.shape
    H = num_heads
    hd = c // H
    m_rows = bt * n

    # ---- QKV projection: one bf16 MXU matmul over all BT*N rows ----
    x2d = x_ref[...].reshape(m_rows, c).astype(jnp.bfloat16)            # (M, C)
    qkv = jnp.dot(x2d, wqkv_ref[...],
                  preferred_element_type=jnp.float32)                   # (M, 3C) f32
    # bf16 operands for the attention matmuls; leading-dim split is free.
    qkv = qkv.astype(jnp.bfloat16).reshape(bt, n, 3 * c)                 # (BT, N, 3C)

    # additive mask bias, hoisted out of the head loop (f32, broadcast over q rows)
    mask_bias = mask_ref[...] * masked_softmax_bias                      # (BT, 1, N)

    # ---- per-head scaled dot-product attention ----
    # Unrolled Python loop over heads keeps every lane-slice start static (no
    # dynamic relayout) and gives the LLO scheduler full cross-head visibility.
    # Each head issues one bt-batched QK^T and one bt-batched PV matmul.
    for h in range(H):
        q_h = qkv[:, :, 0 * c + h * hd: 0 * c + (h + 1) * hd]           # (BT, N, hd)
        k_h = qkv[:, :, 1 * c + h * hd: 1 * c + (h + 1) * hd]
        v_h = qkv[:, :, 2 * c + h * hd: 2 * c + (h + 1) * hd]

        s = jnp.einsum('bqd,bkd->bqk', q_h, k_h,
                       preferred_element_type=jnp.float32) * scale      # (BT, N, N) f32
        s = s + mask_bias                                                # additive bias
        # numerically-stable softmax in f32 (row sums >= 1 after the shift)
        s = s - jnp.max(s, axis=-1, keepdims=True)
        p = jnp.exp(s)
        p = p * pl.reciprocal(jnp.sum(p, axis=-1, keepdims=True), approx=True)

        ctx_h = jnp.einsum('bqk,bkd->bqd', p.astype(jnp.bfloat16), v_h,
                           preferred_element_type=jnp.float32)           # (BT, N, hd)

        # scatter this head's context into the VMEM scratch (static lane slice)
        ctx_ref[:, h * hd:(h + 1) * hd] = (
            ctx_h.reshape(m_rows, hd).astype(jnp.bfloat16))

    # ---- output projection: one bf16 MXU matmul + f32 bias ----
    out = jnp.dot(ctx_ref[...], wproj_ref[...],
                  preferred_element_type=jnp.float32)                    # (M, C) f32
    out = out + bproj_ref[...]                                           # (1, C) broadcast
    o_ref[...] = out.reshape(bt, n, c).astype(o_ref.dtype)


def _pick_batch_tile(B, N, target_rows=256):
    """Largest divisor of B with tile*N <= target_rows (fills the MXU M dim),
    preferring to keep >=2 grid steps (v7x megacore) when that still gives
    >=128 rows per step."""
    divisors = [d for d in range(1, B + 1) if B % d == 0]
    fits = [d for d in divisors if d * N <= target_rows] or [1]
    best = max(fits)
    if best == B and B > 1:
        multi = [d for d in fits if B // d >= 2]
        if multi and max(multi) * N >= 128:
            best = max(multi)
    return best


def masked_attention(x, w_qkv, w_proj, b_proj, mask=None, *, num_heads,
                     masked_softmax_bias=-1000.0):
    """x: (B, N, C); w_qkv: (3C, C) torch layout; w_proj: (C, C) torch layout;
    b_proj: (C,); mask: (B, N) with 1.0 == masked key (or None)."""
    B, N, C = x.shape
    assert C % num_heads == 0
    head_dim = C // num_heads
    scale = head_dim ** (-0.5)

    if mask is None:
        mask = jnp.zeros((B, N), dtype=jnp.float32)

    # torch nn.Linear weights -> (in, out) and bf16 for the MXU (f32 accumulate
    # inside the kernel); bias stays f32.
    w_qkv_t = jnp.asarray(w_qkv).T.astype(jnp.bfloat16)       # (C, 3C)
    w_proj_t = jnp.asarray(w_proj).T.astype(jnp.bfloat16)     # (C, C)
    b_proj_2d = jnp.asarray(b_proj).astype(jnp.float32).reshape(1, C)
    mask3 = jnp.asarray(mask).astype(jnp.float32).reshape(B, 1, N)

    bt = _pick_batch_tile(B, N)
    grid = (B // bt,)

    kernel = partial(_masked_attention_kernel,
                     num_heads=num_heads, scale=scale,
                     masked_softmax_bias=masked_softmax_bias)

    itemsize = jnp.dtype(x.dtype).itemsize
    cost = pl.CostEstimate(
        flops=int(2 * B * N * C * (4 * C + 2 * N)),
        transcendentals=int(B * num_heads * N * N),
        bytes_accessed=int(B * N * C * itemsize            # x
                           + (3 * C * C + C * C) * 2       # bf16 weights
                           + C * 4 + B * N * 4             # bias + mask
                           + B * N * C * itemsize),        # output
    )

    # NOTE(v7x): for large C, grid-invariant weight blocks still get double
    # buffers; if VMEM gets tight, raise vmem_limit_bytes via
    # pltpu.CompilerParams (or single-buffer the weight specs).
    return pl.pallas_call(
        kernel,
        out_shape=jax.ShapeDtypeStruct((B, N, C), x.dtype),
        grid_spec=pltpu.PrefetchScalarGridSpec(
            num_scalar_prefetch=0,
            grid=grid,
            in_specs=[
                pl.BlockSpec((bt, N, C), lambda i: (i, 0, 0)),    # x tile
                pl.BlockSpec((C, 3 * C), lambda i: (0, 0)),       # W_qkv^T (bf16)
                pl.BlockSpec((C, C), lambda i: (0, 0)),           # W_proj^T (bf16)
                pl.BlockSpec((1, C), lambda i: (0, 0)),           # proj bias
                pl.BlockSpec((bt, 1, N), lambda i: (i, 0, 0)),    # mask tile
            ],
            out_specs=pl.BlockSpec((bt, N, C), lambda i: (i, 0, 0)),
            scratch_shapes=[pltpu.VMEM((bt * N, C), jnp.bfloat16)],
        ),
        compiler_params=pltpu.CompilerParams(
            dimension_semantics=("parallel",)),
        cost_estimate=cost,
    )(x, w_qkv_t, w_proj_t, b_proj_2d, mask3)


def masked_attention_ref(x, w_qkv, w_proj, b_proj, mask, *, num_heads,
                         masked_softmax_bias=-1000.0):
    """Pure-JAX f32 reference mirroring the PyTorch forward exactly."""
    B, N, C = x.shape
    hd = C // num_heads
    scale = hd ** (-0.5)
    qkv = x @ w_qkv.T                                     # (B, N, 3C)  (no qkv bias)
    qkv = qkv.reshape(B, N, 3, num_heads, hd).transpose(2, 0, 3, 1, 4)
    q, k, v = qkv[0], qkv[1], qkv[2]                      # (B, H, N, hd)
    attn = jnp.einsum('bhnd,bhmd->bhnm', q, k) * scale
    attn = attn + mask.reshape(B, 1, 1, N) * masked_softmax_bias
    attn = jax.nn.softmax(attn, axis=-1)
    out = jnp.einsum('bhnm,bhmd->bhnd', attn, v)
    out = out.transpose(0, 2, 1, 3).reshape(B, N, C)
    return out @ w_proj.T + b_proj[None, None, :]


if __name__ == "__main__":
    # small shapes consistent with the module
    B, N, C = 2, 16, 64
    num_heads = 8

    key = jax.random.PRNGKey(0)
    kx, kqkv, kproj, kb, km = jax.random.split(key, 5)

    x = jax.random.normal(kx, (B, N, C), dtype=jnp.float32)
    # torch nn.Linear weight layouts: qkv (3C, C), proj (C, C), proj bias (C,)
    w_qkv = jax.random.normal(kqkv, (3 * C, C), dtype=jnp.float32) * 0.05
    w_proj = jax.random.normal(kproj, (C, C), dtype=jnp.float32) * 0.05
    b_proj = jax.random.normal(kb, (C,), dtype=jnp.float32) * 0.05
    # mask: 1.0 -> key masked out (gets -1000 bias), 0.0 -> visible
    mask = (jax.random.uniform(km, (B, N)) < 0.25).astype(jnp.float32)

    out = masked_attention(x, w_qkv, w_proj, b_proj, mask, num_heads=num_heads)
    out = jax.block_until_ready(out)

    ref = masked_attention_ref(x, w_qkv, w_proj, b_proj, mask,
                               num_heads=num_heads)

    assert out.shape == (B, N, C)
    max_err = jnp.max(jnp.abs(out - ref))
    # bf16 MXU inputs + approx reciprocal -> slightly looser tolerance vs f32 ref
    assert jnp.allclose(out, ref, atol=3e-2, rtol=3e-2), f"max abs err {max_err}"

    print("KERNEL_OK")
</pallas_src>

<mosaic_0001>
module attributes {stable_mosaic.version = 11 : i64} {
  func.func @_masked_attention_kernel(%arg0: i32, %arg1: memref<2x16x64xf32, #tpu.memory_space<vmem>>, %arg2: memref<64x192xbf16, #tpu.memory_space<vmem>>, %arg3: memref<64x64xbf16, #tpu.memory_space<vmem>>, %arg4: memref<1x64xf32, #tpu.memory_space<vmem>>, %arg5: memref<2x1x16xf32, #tpu.memory_space<vmem>>, %arg6: memref<2x16x64xf32, #tpu.memory_space<vmem>>, %arg7: memref<32x64xbf16, #tpu.memory_space<vmem>>) attributes {dimension_semantics = [#tpu.dimension_semantics<parallel>], iteration_bounds = array<i64: 1>, scalar_prefetch = 0 : i64, scratch_operands = 1 : i64, tpu.core_type = #tpu.core_type<tc>, window_params = [{transform_indices = @transform_0, window_bounds = array<i64: 2, 16, 64>}, {pipeline_mode = #tpu.pipeline_mode<synchronous>, transform_indices = @transform_1, window_bounds = array<i64: 64, 192>}, {pipeline_mode = #tpu.pipeline_mode<synchronous>, transform_indices = @transform_2, window_bounds = array<i64: 64, 64>}, {pipeline_mode = #tpu.pipeline_mode<synchronous>, transform_indices = @transform_3, window_bounds = array<i64: 1, 64>}, {transform_indices = @transform_4, window_bounds = array<i64: 2, 1, 16>}, {transform_indices = @transform_5, window_bounds = array<i64: 2, 16, 64>}]} {
    %c0 = arith.constant 0 : index
    %c0_0 = arith.constant 0 : index
    %c0_1 = arith.constant 0 : index
    %0 = vector.load %arg1[%c0, %c0_0, %c0_1] : memref<2x16x64xf32, #tpu.memory_space<vmem>>, vector<2x16x64xf32>
    %1 = vector.shape_cast %0 : vector<2x16x64xf32> to vector<32x64xf32>
    %2 = arith.truncf %1 : vector<32x64xf32> to vector<32x64xbf16>
    %c0_2 = arith.constant 0 : index
    %c0_3 = arith.constant 0 : index
    %3 = vector.load %arg2[%c0_2, %c0_3] : memref<64x192xbf16, #tpu.memory_space<vmem>>, vector<64x192xbf16>
    %cst = arith.constant dense<0.000000e+00> : vector<32x192xf32>
    %4 = tpu.matmul %2, %3, %cst {dimension_numbers = #tpu.dot_dimension_numbers<[1], [0], [0], [1], [0, 0, 1, 1], [], []>} : vector<32x64xbf16>, vector<64x192xbf16>, vector<32x192xf32> -> vector<32x192xf32>
    %5 = arith.truncf %4 : vector<32x192xf32> to vector<32x192xbf16>
    %6 = vector.shape_cast %5 : vector<32x192xbf16> to vector<2x16x192xbf16>
    %c0_4 = arith.constant 0 : index
    %c0_5 = arith.constant 0 : index
    %c0_6 = arith.constant 0 : index
    %7 = vector.load %arg5[%c0_4, %c0_5, %c0_6] : memref<2x1x16xf32, #tpu.memory_space<vmem>>, vector<2x1x16xf32>
    %cst_7 = arith.constant -1.000000e+03 : f32
    %8 = vector.broadcast %cst_7 : f32 to vector<2x1x16xf32>
    %9 = arith.mulf %7, %8 : vector<2x1x16xf32>
    %10 = vector.extract_strided_slice %6 {offsets = [0, 0, 0], sizes = [2, 16, 8], strides = [1, 1, 1]} : vector<2x16x192xbf16> to vector<2x16x8xbf16>
    %11 = vector.extract_strided_slice %6 {offsets = [0, 0, 64], sizes = [2, 16, 8], strides = [1, 1, 1]} : vector<2x16x192xbf16> to vector<2x16x8xbf16>
    %12 = vector.extract_strided_slice %6 {offsets = [0, 0, 128], sizes = [2, 16, 8], strides = [1, 1, 1]} : vector<2x16x192xbf16> to vector<2x16x8xbf16>
    "tpu.trace_start"() <{level = 10 : i32, message = "bqd,bkd->bqk"}> : () -> ()
    %cst_8 = arith.constant dense<0.000000e+00> : vector<2x16x16xf32>
    %13 = tpu.matmul %10, %11, %cst_8 {dimension_numbers = #tpu.dot_dimension_numbers<[2], [2], [1], [1], [0, 0, 0, 1, 1, 1], [0], [0]>} : vector<2x16x8xbf16>, vector<2x16x8xbf16>, vector<2x16x16xf32> -> vector<2x16x16xf32>
    "tpu.trace_stop"() : () -> ()
    %cst_9 = arith.constant 0.353553385 : f32
    %14 = vector.broadcast %cst_9 : f32 to vector<2x16x16xf32>
    %15 = arith.mulf %13, %14 : vector<2x16x16xf32>
    %16 = vector.broadcast %9 : vector<2x1x16xf32> to vector<2x16x16xf32>
    %17 = arith.addf %15, %16 : vector<2x16x16xf32>
    %cst_10 = arith.constant dense<0xFF800000> : vector<2x16xf32>
    %18 = vector.multi_reduction <maximumf>, %17, %cst_10 [2] : vector<2x16x16xf32> to vector<2x16xf32>
    %19 = vector.shape_cast %18 : vector<2x16xf32> to vector<2x16x1xf32>
    %20 = vector.broadcast %19 : vector<2x16x1xf32> to vector<2x16x16xf32>
    %21 = arith.subf %17, %20 : vector<2x16x16xf32>
    %22 = math.exp %21 : vector<2x16x16xf32>
    %cst_11 = arith.constant dense<0.000000e+00> : vector<2x16xf32>
    %23 = vector.multi_reduction <add>, %22, %cst_11 [2] : vector<2x16x16xf32> to vector<2x16xf32>
    %24 = vector.shape_cast %23 : vector<2x16xf32> to vector<2x16x1xf32>
    %25 = tpu.reciprocal %24 {approx = true} : vector<2x16x1xf32> -> vector<2x16x1xf32>
    %26 = vector.broadcast %25 : vector<2x16x1xf32> to vector<2x16x16xf32>
    %27 = arith.mulf %22, %26 : vector<2x16x16xf32>
    %28 = arith.truncf %27 : vector<2x16x16xf32> to vector<2x16x16xbf16>
    "tpu.trace_start"() <{level = 10 : i32, message = "bqk,bkd->bqd"}> : () -> ()
    %cst_12 = arith.constant dense<0.000000e+00> : vector<2x16x8xf32>
    %29 = tpu.matmul %28, %12, %cst_12 {dimension_numbers = #tpu.dot_dimension_numbers<[2], [1], [1], [2], [0, 0, 0, 1, 1, 2], [0], [0]>} : vector<2x16x16xbf16>, vector<2x16x8xbf16>, vector<2x16x8xf32> -> vector<2x16x8xf32>
    "tpu.trace_stop"() : () -> ()
    %30 = vector.shape_cast %29 : vector<2x16x8xf32> to vector<32x8xf32>
    %31 = arith.truncf %30 : vector<32x8xf32> to vector<32x8xbf16>
    %c0_13 = arith.constant 0 : index
    %c0_14 = arith.constant 0 : index
    %32 = vector.load %arg7[%c0_13, %c0_14] : memref<32x64xbf16, #tpu.memory_space<vmem>>, vector<32x8xbf16>
    tpu.vector_store %arg7[%c0_13, %c0_14], %31 {strides = array<i32>} : memref<32x64xbf16, #tpu.memory_space<vmem>>, vector<32x8xbf16>,
    %33 = vector.extract_strided_slice %6 {offsets = [0, 0, 8], sizes = [2, 16, 8], strides = [1, 1, 1]} : vector<2x16x192xbf16> to vector<2x16x8xbf16>
    %34 = vector.extract_strided_slice %6 {offsets = [0, 0, 72], sizes = [2, 16, 8], strides = [1, 1, 1]} : vector<2x16x192xbf16> to vector<2x16x8xbf16>
    %35 = vector.extract_strided_slice %6 {offsets = [0, 0, 136], sizes = [2, 16, 8], strides = [1, 1, 1]} : vector<2x16x192xbf16> to vector<2x16x8xbf16>
    "tpu.trace_start"() <{level = 10 : i32, message = "bqd,bkd->bqk"}> : () -> ()
    %cst_15 = arith.constant dense<0.000000e+00> : vector<2x16x16xf32>
    %36 = tpu.matmul %33, %34, %cst_15 {dimension_numbers = #tpu.dot_dimension_numbers<[2], [2], [1], [1], [0, 0, 0, 1, 1, 1], [0], [0]>} : vector<2x16x8xbf16>, vector<2x16x8xbf16>, vector<2x16x16xf32> -> vector<2x16x16xf32>
    "tpu.trace_stop"() : () -> ()
    %cst_16 = arith.constant 0.353553385 : f32
    %37 = vector.broadcast %cst_16 : f32 to vector<2x16x16xf32>
    %38 = arith.mulf %36, %37 : vector<2x16x16xf32>
    %39 = vector.broadcast %9 : vector<2x1x16xf32> to vector<2x16x16xf32>
    %40 = arith.addf %38, %39 : vector<2x16x16xf32>
    %cst_17 = arith.constant dense<0xFF800000> : vector<2x16xf32>
    %41 = vector.multi_reduction <maximumf>, %40, %cst_17 [2] : vector<2x16x16xf32> to vector<2x16xf32>
    %42 = vector.shape_cast %41 : vector<2x16xf32> to vector<2x16x1xf32>
    %43 = vector.broadcast %42 : vector<2x16x1xf32> to vector<2x16x16xf32>
    %44 = arith.subf %40, %43 : vector<2x16x16xf32>
    %45 = math.exp %44 : vector<2x16x16xf32>
    %cst_18 = arith.constant dense<0.000000e+00> : vector<2x16xf32>
    %46 = vector.multi_reduction <add>, %45, %cst_18 [2] : vector<2x16x16xf32> to vector<2x16xf32>
    %47 = vector.shape_cast %46 : vector<2x16xf32> to vector<2x16x1xf32>
    %48 = tpu.reciprocal %47 {approx = true} : vector<2x16x1xf32> -> vector<2x16x1xf32>
    %49 = vector.broadcast %48 : vector<2x16x1xf32> to vector<2x16x16xf32>
    %50 = arith.mulf %45, %49 : vector<2x16x16xf32>
    %51 = arith.truncf %50 : vector<2x16x16xf32> to vector<2x16x16xbf16>
    "tpu.trace_start"() <{level = 10 : i32, message = "bqk,bkd->bqd"}> : () -> ()
    %cst_19 = arith.constant dense<0.000000e+00> : vector<2x16x8xf32>
    %52 = tpu.matmul %51, %35, %cst_19 {dimension_numbers = #tpu.dot_dimension_numbers<[2], [1], [1], [2], [0, 0, 0, 1, 1, 2], [0], [0]>} : vector<2x16x16xbf16>, vector<2x16x8xbf16>, vector<2x16x8xf32> -> vector<2x16x8xf32>
    "tpu.trace_stop"() : () -> ()
    %53 = vector.shape_cast %52 : vector<2x16x8xf32> to vector<32x8xf32>
    %54 = arith.truncf %53 : vector<32x8xf32> to vector<32x8xbf16>
    %c0_20 = arith.constant 0 : index
    %c8 = arith.constant 8 : index
    %55 = vector.load %arg7[%c0_20, %c8] : memref<32x64xbf16, #tpu.memory_space<vmem>>, vector<32x8xbf16>
    tpu.vector_store %arg7[%c0_20, %c8], %54 {strides = array<i32>} : memref<32x64xbf16, #tpu.memory_space<vmem>>, vector<32x8xbf16>,
    %56 = vector.extract_strided_slice %6 {offsets = [0, 0, 16], sizes = [2, 16, 8], strides = [1, 1, 1]} : vector<2x16x192xbf16> to vector<2x16x8xbf16>
    %57 = vector.extract_strided_slice %6 {offsets = [0, 0, 80], sizes = [2, 16, 8], strides = [1, 1, 1]} : vector<2x16x192xbf16> to vector<2x16x8xbf16>
    %58 = vector.extract_strided_slice %6 {offsets = [0, 0, 144], sizes = [2, 16, 8], strides = [1, 1, 1]} : vector<2x16x192xbf16> to vector<2x16x8xbf16>
    "tpu.trace_start"() <{level = 10 : i32, message = "bqd,bkd->bqk"}> : () -> ()
    %cst_21 = arith.constant dense<0.000000e+00> : vector<2x16x16xf32>
    %59 = tpu.matmul %56, %57, %cst_21 {dimension_numbers = #tpu.dot_dimension_numbers<[2], [2], [1], [1], [0, 0, 0, 1, 1, 1], [0], [0]>} : vector<2x16x8xbf16>, vector<2x16x8xbf16>, vector<2x16x16xf32> -> vector<2x16x16xf32>
    "tpu.trace_stop"() : () -> ()
    %cst_22 = arith.constant 0.353553385 : f32
    %60 = vector.broadcast %cst_22 : f32 to vector<2x16x16xf32>
    %61 = arith.mulf %59, %60 : vector<2x16x16xf32>
    %62 = vector.broadcast %9 : vector<2x1x16xf32> to vector<2x16x16xf32>
    %63 = arith.addf %61, %62 : vector<2x16x16xf32>
    %cst_23 = arith.constant dense<0xFF800000> : vector<2x16xf32>
    %64 = vector.multi_reduction <maximumf>, %63, %cst_23 [2] : vector<2x16x16xf32> to vector<2x16xf32>
    %65 = vector.shape_cast %64 : vector<2x16xf32> to vector<2x16x1xf32>
    %66 = vector.broadcast %65 : vector<2x16x1xf32> to vector<2x16x16xf32>
    %67 = arith.subf %63, %66 : vector<2x16x16xf32>
    %68 = math.exp %67 : vector<2x16x16xf32>
    %cst_24 = arith.constant dense<0.000000e+00> : vector<2x16xf32>
    %69 = vector.multi_reduction <add>, %68, %cst_24 [2] : vector<2x16x16xf32> to vector<2x16xf32>
    %70 = vector.shape_cast %69 : vector<2x16xf32> to vector<2x16x1xf32>
    %71 = tpu.reciprocal %70 {approx = true} : vector<2x16x1xf32> -> vector<2x16x1xf32>
    %72 = vector.broadcast %71 : vector<2x16x1xf32> to vector<2x16x16xf32>
    %73 = arith.mulf %68, %72 : vector<2x16x16xf32>
    %74 = arith.truncf %73 : vector<2x16x16xf32> to vector<2x16x16xbf16>
    "tpu.trace_start"() <{level = 10 : i32, message = "bqk,bkd->bqd"}> : () -> ()
    %cst_25 = arith.constant dense<0.000000e+00> : vector<2x16x8xf32>
    %75 = tpu.matmul %74, %58, %cst_25 {dimension_numbers = #tpu.dot_dimension_numbers<[2], [1], [1], [2], [0, 0, 0, 1, 1, 2], [0], [0]>} : vector<2x16x16xbf16>, vector<2x16x8xbf16>, vector<2x16x8xf32> -> vector<2x16x8xf32>
    "tpu.trace_stop"() : () -> ()
    %76 = vector.shape_cast %75 : vector<2x16x8xf32> to vector<32x8xf32>
    %77 = arith.truncf %76 : vector<32x8xf32> to vector<32x8xbf16>
    %c0_26 = arith.constant 0 : index
    %c16 = arith.constant 16 : index
    %78 = vector.load %arg7[%c0_26, %c16] : memref<32x64xbf16, #tpu.memory_space<vmem>>, vector<32x8xbf16>
    tpu.vector_store %arg7[%c0_26, %c16], %77 {strides = array<i32>} : memref<32x64xbf16, #tpu.memory_space<vmem>>, vector<32x8xbf16>,
    %79 = vector.extract_strided_slice %6 {offsets = [0, 0, 24], sizes = [2, 16, 8], strides = [1, 1, 1]} : vector<2x16x192xbf16> to vector<2x16x8xbf16>
    %80 = vector.extract_strided_slice %6 {offsets = [0, 0, 88], sizes = [2, 16, 8], strides = [1, 1, 1]} : vector<2x16x192xbf16> to vector<2x16x8xbf16>
    %81 = vector.extract_strided_slice %6 {offsets = [0, 0, 152], sizes = [2, 16, 8], strides = [1, 1, 1]} : vector<2x16x192xbf16> to vector<2x16x8xbf16>
    "tpu.trace_start"() <{level = 10 : i32, message = "bqd,bkd->bqk"}> : () -> ()
    %cst_27 = arith.constant dense<0.000000e+00> : vector<2x16x16xf32>
    %82 = tpu.matmul %79, %80, %cst_27 {dimension_numbers = #tpu.dot_dimension_numbers<[2], [2], [1], [1], [0, 0, 0, 1, 1, 1], [0], [0]>} : vector<2x16x8xbf16>, vector<2x16x8xbf16>, vector<2x16x16xf32> -> vector<2x16x16xf32>
    "tpu.trace_stop"() : () -> ()
    %cst_28 = arith.constant 0.353553385 : f32
    %83 = vector.broadcast %cst_28 : f32 to vector<2x16x16xf32>
    %84 = arith.mulf %82, %83 : vector<2x16x16xf32>
    %85 = vector.broadcast %9 : vector<2x1x16xf32> to vector<2x16x16xf32>
    %86 = arith.addf %84, %85 : vector<2x16x16xf32>
    %cst_29 = arith.constant dense<0xFF800000> : vector<2x16xf32>
    %87 = vector.multi_reduction <maximumf>, %86, %cst_29 [2] : vector<2x16x16xf32> to vector<2x16xf32>
    %88 = vector.shape_cast %87 : vector<2x16xf32> to vector<2x16x1xf32>
    %89 = vector.broadcast %88 : vector<2x16x1xf32> to vector<2x16x16xf32>
    %90 = arith.subf %86, %89 : vector<2x16x16xf32>
    %91 = math.exp %90 : vector<2x16x16xf32>
    %cst_30 = arith.constant dense<0.000000e+00> : vector<2x16xf32>
    %92 = vector.multi_reduction <add>, %91, %cst_30 [2] : vector<2x16x16xf32> to vector<2x16xf32>
    %93 = vector.shape_cast %92 : vector<2x16xf32> to vector<2x16x1xf32>
    %94 = tpu.reciprocal %93 {approx = true} : vector<2x16x1xf32> -> vector<2x16x1xf32>
    %95 = vector.broadcast %94 : vector<2x16x1xf32> to vector<2x16x16xf32>
    %96 = arith.mulf %91, %95 : vector<2x16x16xf32>
    %97 = arith.truncf %96 : vector<2x16x16xf32> to vector<2x16x16xbf16>
    "tpu.trace_start"() <{level = 10 : i32, message = "bqk,bkd->bqd"}> : () -> ()
    %cst_31 = arith.constant dense<0.000000e+00> : vector<2x16x8xf32>
    %98 = tpu.matmul %97, %81, %cst_31 {dimension_numbers = #tpu.dot_dimension_numbers<[2], [1], [1], [2], [0, 0, 0, 1, 1, 2], [0], [0]>} : vector<2x16x16xbf16>, vector<2x16x8xbf16>, vector<2x16x8xf32> -> vector<2x16x8xf32>
    "tpu.trace_stop"() : () -> ()
    %99 = vector.shape_cast %98 : vector<2x16x8xf32> to vector<32x8xf32>
    %100 = arith.truncf %99 : vector<32x8xf32> to vector<32x8xbf16>
    %c0_32 = arith.constant 0 : index
    %c24 = arith.constant 24 : index
    %101 = vector.load %arg7[%c0_32, %c24] : memref<32x64xbf16, #tpu.memory_space<vmem>>, vector<32x8xbf16>
    tpu.vector_store %arg7[%c0_32, %c24], %100 {strides = array<i32>} : memref<32x64xbf16, #tpu.memory_space<vmem>>, vector<32x8xbf16>,
    %102 = vector.extract_strided_slice %6 {offsets = [0, 0, 32], sizes = [2, 16, 8], strides = [1, 1, 1]} : vector<2x16x192xbf16> to vector<2x16x8xbf16>
    %103 = vector.extract_strided_slice %6 {offsets = [0, 0, 96], sizes = [2, 16, 8], strides = [1, 1, 1]} : vector<2x16x192xbf16> to vector<2x16x8xbf16>
    %104 = vector.extract_strided_slice %6 {offsets = [0, 0, 160], sizes = [2, 16, 8], strides = [1, 1, 1]} : vector<2x16x192xbf16> to vector<2x16x8xbf16>
    "tpu.trace_start"() <{level = 10 : i32, message = "bqd,bkd->bqk"}> : () -> ()
    %cst_33 = arith.constant dense<0.000000e+00> : vector<2x16x16xf32>
    %105 = tpu.matmul %102, %103, %cst_33 {dimension_numbers = #tpu.dot_dimension_numbers<[2], [2], [1], [1], [0, 0, 0, 1, 1, 1], [0], [0]>} : vector<2x16x8xbf16>, vector<2x16x8xbf16>, vector<2x16x16xf32> -> vector<2x16x16xf32>
    "tpu.trace_stop"() : () -> ()
    %cst_34 = arith.constant 0.353553385 : f32
    %106 = vector.broadcast %cst_34 : f32 to vector<2x16x16xf32>
    %107 = arith.mulf %105, %106 : vector<2x16x16xf32>
    %108 = vector.broadcast %9 : vector<2x1x16xf32> to vector<2x16x16xf32>
    %109 = arith.addf %107, %108 : vector<2x16x16xf32>
    %cst_35 = arith.constant dense<0xFF800000> : vector<2x16xf32>
    %110 = vector.multi_reduction <maximumf>, %109, %cst_35 [2] : vector<2x16x16xf32> to vector<2x16xf32>
    %111 = vector.shape_cast %110 : vector<2x16xf32> to vector<2x16x1xf32>
    %112 = vector.broadcast %111 : vector<2x16x1xf32> to vector<2x16x16xf32>
    %113 = arith.subf %109, %112 : vector<2x16x16xf32>
    %114 = math.exp %113 : vector<2x16x16xf32>
    %cst_36 = arith.constant dense<0.000000e+00> : vector<2x16xf32>
    %115 = vector.multi_reduction <add>, %114, %cst_36 [2] : vector<2x16x16xf32> to vector<2x16xf32>
    %116 = vector.shape_cast %115 : vector<2x16xf32> to vector<2x16x1xf32>
    %117 = tpu.reciprocal %116 {approx = true} : vector<2x16x1xf32> -> vector<2x16x1xf32>
    %118 = vector.broadcast %117 : vector<2x16x1xf32> to vector<2x16x16xf32>
    %119 = arith.mulf %114, %118 : vector<2x16x16xf32>
    %120 = arith.truncf %119 : vector<2x16x16xf32> to vector<2x16x16xbf16>
    "tpu.trace_start"() <{level = 10 : i32, message = "bqk,bkd->bqd"}> : () -> ()
    %cst_37 = arith.constant dense<0.000000e+00> : vector<2x16x8xf32>
    %121 = tpu.matmul %120, %104, %cst_37 {dimension_numbers = #tpu.dot_dimension_numbers<[2], [1], [1], [2], [0, 0, 0, 1, 1, 2], [0], [0]>} : vector<2x16x16xbf16>, vector<2x16x8xbf16>, vector<2x16x8xf32> -> vector<2x16x8xf32>
    "tpu.trace_stop"() : () -> ()
    %122 = vector.shape_cast %121 : vector<2x16x8xf32> to vector<32x8xf32>
    %123 = arith.truncf %122 : vector<32x8xf32> to vector<32x8xbf16>
    %c0_38 = arith.constant 0 : index
    %c32 = arith.constant 32 : index
    %124 = vector.load %arg7[%c0_38, %c32] : memref<32x64xbf16, #tpu.memory_space<vmem>>, vector<32x8xbf16>
    tpu.vector_store %arg7[%c0_38, %c32], %123 {strides = array<i32>} : memref<32x64xbf16, #tpu.memory_space<vmem>>, vector<32x8xbf16>,
    %125 = vector.extract_strided_slice %6 {offsets = [0, 0, 40], sizes = [2, 16, 8], strides = [1, 1, 1]} : vector<2x16x192xbf16> to vector<2x16x8xbf16>
    %126 = vector.extract_strided_slice %6 {offsets = [0, 0, 104], sizes = [2, 16, 8], strides = [1, 1, 1]} : vector<2x16x192xbf16> to vector<2x16x8xbf16>
    %127 = vector.extract_strided_slice %6 {offsets = [0, 0, 168], sizes = [2, 16, 8], strides = [1, 1, 1]} : vector<2x16x192xbf16> to vector<2x16x8xbf16>
    "tpu.trace_start"() <{level = 10 : i32, message = "bqd,bkd->bqk"}> : () -> ()
    %cst_39 = arith.constant dense<0.000000e+00> : vector<2x16x16xf32>
    %128 = tpu.matmul %125, %126, %cst_39 {dimension_numbers = #tpu.dot_dimension_numbers<[2], [2], [1], [1], [0, 0, 0, 1, 1, 1], [0], [0]>} : vector<2x16x8xbf16>, vector<2x16x8xbf16>, vector<2x16x16xf32> -> vector<2x16x16xf32>
    "tpu.trace_stop"() : () -> ()
    %cst_40 = arith.constant 0.353553385 : f32
    %129 = vector.broadcast %cst_40 : f32 to vector<2x16x16xf32>
    %130 = arith.mulf %128, %129 : vector<2x16x16xf32>
    %131 = vector.broadcast %9 : vector<2x1x16xf32> to vector<2x16x16xf32>
    %132 = arith.addf %130, %131 : vector<2x16x16xf32>
    %cst_41 = arith.constant dense<0xFF800000> : vector<2x16xf32>
    %133 = vector.multi_reduction <maximumf>, %132, %cst_41 [2] : vector<2x16x16xf32> to vector<2x16xf32>
    %134 = vector.shape_cast %133 : vector<2x16xf32> to vector<2x16x1xf32>
    %135 = vector.broadcast %134 : vector<2x16x1xf32> to vector<2x16x16xf32>
    %136 = arith.subf %132, %135 : vector<2x16x16xf32>
    %137 = math.exp %136 : vector<2x16x16xf32>
    %cst_42 = arith.constant dense<0.000000e+00> : vector<2x16xf32>
    %138 = vector.multi_reduction <add>, %137, %cst_42 [2] : vector<2x16x16xf32> to vector<2x16xf32>
    %139 = vector.shape_cast %138 : vector<2x16xf32> to vector<2x16x1xf32>
    %140 = tpu.reciprocal %139 {approx = true} : vector<2x16x1xf32> -> vector<2x16x1xf32>
    %141 = vector.broadcast %140 : vector<2x16x1xf32> to vector<2x16x16xf32>
    %142 = arith.mulf %137, %141 : vector<2x16x16xf32>
    %143 = arith.truncf %142 : vector<2x16x16xf32> to vector<2x16x16xbf16>
    "tpu.trace_start"() <{level = 10 : i32, message = "bqk,bkd->bqd"}> : () -> ()
    %cst_43 = arith.constant dense<0.000000e+00> : vector<2x16x8xf32>
    %144 = tpu.matmul %143, %127, %cst_43 {dimension_numbers = #tpu.dot_dimension_numbers<[2], [1], [1], [2], [0, 0, 0, 1, 1, 2], [0], [0]>} : vector<2x16x16xbf16>, vector<2x16x8xbf16>, vector<2x16x8xf32> -> vector<2x16x8xf32>
    "tpu.trace_stop"() : () -> ()
    %145 = vector.shape_cast %144 : vector<2x16x8xf32> to vector<32x8xf32>
    %146 = arith.truncf %145 : vector<32x8xf32> to vector<32x8xbf16>
    %c0_44 = arith.constant 0 : index
    %c40 = arith.constant 40 : index
    %147 = vector.load %arg7[%c0_44, %c40] : memref<32x64xbf16, #tpu.memory_space<vmem>>, vector<32x8xbf16>
    tpu.vector_store %arg7[%c0_44, %c40], %146 {strides = array<i32>} : memref<32x64xbf16, #tpu.memory_space<vmem>>, vector<32x8xbf16>,
    %148 = vector.extract_strided_slice %6 {offsets = [0, 0, 48], sizes = [2, 16, 8], strides = [1, 1, 1]} : vector<2x16x192xbf16> to vector<2x16x8xbf16>
    %149 = vector.extract_strided_slice %6 {offsets = [0, 0, 112], sizes = [2, 16, 8], strides = [1, 1, 1]} : vector<2x16x192xbf16> to vector<2x16x8xbf16>
    %150 = vector.extract_strided_slice %6 {offsets = [0, 0, 176], sizes = [2, 16, 8], strides = [1, 1, 1]} : vector<2x16x192xbf16> to vector<2x16x8xbf16>
    "tpu.trace_start"() <{level = 10 : i32, message = "bqd,bkd->bqk"}> : () -> ()
    %cst_45 = arith.constant dense<0.000000e+00> : vector<2x16x16xf32>
    %151 = tpu.matmul %148, %149, %cst_45 {dimension_numbers = #tpu.dot_dimension_numbers<[2], [2], [1], [1], [0, 0, 0, 1, 1, 1], [0], [0]>} : vector<2x16x8xbf16>, vector<2x16x8xbf16>, vector<2x16x16xf32> -> vector<2x16x16xf32>
    "tpu.trace_stop"() : () -> ()
    %cst_46 = arith.constant 0.353553385 : f32
    %152 = vector.broadcast %cst_46 : f32 to vector<2x16x16xf32>
    %153 = arith.mulf %151, %152 : vector<2x16x16xf32>
    %154 = vector.broadcast %9 : vector<2x1x16xf32> to vector<2x16x16xf32>
    %155 = arith.addf %153, %154 : vector<2x16x16xf32>
    %cst_47 = arith.constant dense<0xFF800000> : vector<2x16xf32>
    %156 = vector.multi_reduction <maximumf>, %155, %cst_47 [2] : vector<2x16x16xf32> to vector<2x16xf32>
    %157 = vector.shape_cast %156 : vector<2x16xf32> to vector<2x16x1xf32>
    %158 = vector.broadcast %157 : vector<2x16x1xf32> to vector<2x16x16xf32>
    %159 = arith.subf %155, %158 : vector<2x16x16xf32>
    %160 = math.exp %159 : vector<2x16x16xf32>
    %cst_48 = arith.constant dense<0.000000e+00> : vector<2x16xf32>
    %161 = vector.multi_reduction <add>, %160, %cst_48 [2] : vector<2x16x16xf32> to vector<2x16xf32>
    %162 = vector.shape_cast %161 : vector<2x16xf32> to vector<2x16x1xf32>
    %163 = tpu.reciprocal %162 {approx = true} : vector<2x16x1xf32> -> vector<2x16x1xf32>
    %164 = vector.broadcast %163 : vector<2x16x1xf32> to vector<2x16x16xf32>
    %165 = arith.mulf %160, %164 : vector<2x16x16xf32>
    %166 = arith.truncf %165 : vector<2x16x16xf32> to vector<2x16x16xbf16>
    "tpu.trace_start"() <{level = 10 : i32, message = "bqk,bkd->bqd"}> : () -> ()
    %cst_49 = arith.constant dense<0.000000e+00> : vector<2x16x8xf32>
    %167 = tpu.matmul %166, %150, %cst_49 {dimension_numbers = #tpu.dot_dimension_numbers<[2], [1], [1], [2], [0, 0, 0, 1, 1, 2], [0], [0]>} : vector<2x16x16xbf16>, vector<2x16x8xbf16>, vector<2x16x8xf32> -> vector<2x16x8xf32>
    "tpu.trace_stop"() : () -> ()
    %168 = vector.shape_cast %167 : vector<2x16x8xf32> to vector<32x8xf32>
    %169 = arith.truncf %168 : vector<32x8xf32> to vector<32x8xbf16>
    %c0_50 = arith.constant 0 : index
    %c48 = arith.constant 48 : index
    %170 = vector.load %arg7[%c0_50, %c48] : memref<32x64xbf16, #tpu.memory_space<vmem>>, vector<32x8xbf16>
    tpu.vector_store %arg7[%c0_50, %c48], %169 {strides = array<i32>} : memref<32x64xbf16, #tpu.memory_space<vmem>>, vector<32x8xbf16>,
    %171 = vector.extract_strided_slice %6 {offsets = [0, 0, 56], sizes = [2, 16, 8], strides = [1, 1, 1]} : vector<2x16x192xbf16> to vector<2x16x8xbf16>
    %172 = vector.extract_strided_slice %6 {offsets = [0, 0, 120], sizes = [2, 16, 8], strides = [1, 1, 1]} : vector<2x16x192xbf16> to vector<2x16x8xbf16>
    %173 = vector.extract_strided_slice %6 {offsets = [0, 0, 184], sizes = [2, 16, 8], strides = [1, 1, 1]} : vector<2x16x192xbf16> to vector<2x16x8xbf16>
    "tpu.trace_start"() <{level = 10 : i32, message = "bqd,bkd->bqk"}> : () -> ()
    %cst_51 = arith.constant dense<0.000000e+00> : vector<2x16x16xf32>
    %174 = tpu.matmul %171, %172, %cst_51 {dimension_numbers = #tpu.dot_dimension_numbers<[2], [2], [1], [1], [0, 0, 0, 1, 1, 1], [0], [0]>} : vector<2x16x8xbf16>, vector<2x16x8xbf16>, vector<2x16x16xf32> -> vector<2x16x16xf32>
    "tpu.trace_stop"() : () -> ()
    %cst_52 = arith.constant 0.353553385 : f32
    %175 = vector.broadcast %cst_52 : f32 to vector<2x16x16xf32>
    %176 = arith.mulf %174, %175 : vector<2x16x16xf32>
    %177 = vector.broadcast %9 : vector<2x1x16xf32> to vector<2x16x16xf32>
    %178 = arith.addf %176, %177 : vector<2x16x16xf32>
    %cst_53 = arith.constant dense<0xFF800000> : vector<2x16xf32>
    %179 = vector.multi_reduction <maximumf>, %178, %cst_53 [2] : vector<2x16x16xf32> to vector<2x16xf32>
    %180 = vector.shape_cast %179 : vector<2x16xf32> to vector<2x16x1xf32>
    %181 = vector.broadcast %180 : vector<2x16x1xf32> to vector<2x16x16xf32>
    %182 = arith.subf %178, %181 : vector<2x16x16xf32>
    %183 = math.exp %182 : vector<2x16x16xf32>
    %cst_54 = arith.constant dense<0.000000e+00> : vector<2x16xf32>
    %184 = vector.multi_reduction <add>, %183, %cst_54 [2] : vector<2x16x16xf32> to vector<2x16xf32>
    %185 = vector.shape_cast %184 : vector<2x16xf32> to vector<2x16x1xf32>
    %186 = tpu.reciprocal %185 {approx = true} : vector<2x16x1xf32> -> vector<2x16x1xf32>
    %187 = vector.broadcast %186 : vector<2x16x1xf32> to vector<2x16x16xf32>
    %188 = arith.mulf %183, %187 : vector<2x16x16xf32>
    %189 = arith.truncf %188 : vector<2x16x16xf32> to vector<2x16x16xbf16>
    "tpu.trace_start"() <{level = 10 : i32, message = "bqk,bkd->bqd"}> : () -> ()
    %cst_55 = arith.constant dense<0.000000e+00> : vector<2x16x8xf32>
    %190 = tpu.matmul %189, %173, %cst_55 {dimension_numbers = #tpu.dot_dimension_numbers<[2], [1], [1], [2], [0, 0, 0, 1, 1, 2], [0], [0]>} : vector<2x16x16xbf16>, vector<2x16x8xbf16>, vector<2x16x8xf32> -> vector<2x16x8xf32>
    "tpu.trace_stop"() : () -> ()
    %191 = vector.shape_cast %190 : vector<2x16x8xf32> to vector<32x8xf32>
    %192 = arith.truncf %191 : vector<32x8xf32> to vector<32x8xbf16>
    %c0_56 = arith.constant 0 : index
    %c56 = arith.constant 56 : index
    %193 = vector.load %arg7[%c0_56, %c56] : memref<32x64xbf16, #tpu.memory_space<vmem>>, vector<32x8xbf16>
    tpu.vector_store %arg7[%c0_56, %c56], %192 {strides = array<i32>} : memref<32x64xbf16, #tpu.memory_space<vmem>>, vector<32x8xbf16>,
    %c0_57 = arith.constant 0 : index
    %c0_58 = arith.constant 0 : index
    %194 = vector.load %arg7[%c0_57, %c0_58] : memref<32x64xbf16, #tpu.memory_space<vmem>>, vector<32x64xbf16>
    %c0_59 = arith.constant 0 : index
    %c0_60 = arith.constant 0 : index
    %195 = vector.load %arg3[%c0_59, %c0_60] : memref<64x64xbf16, #tpu.memory_space<vmem>>, vector<64x64xbf16>
    %cst_61 = arith.constant dense<0.000000e+00> : vector<32x64xf32>
    %196 = tpu.matmul %194, %195, %cst_61 {dimension_numbers = #tpu.dot_dimension_numbers<[1], [0], [0], [1], [0, 0, 1, 1], [], []>} : vector<32x64xbf16>, vector<64x64xbf16>, vector<32x64xf32> -> vector<32x64xf32>
    %c0_62 = arith.constant 0 : index
    %c0_63 = arith.constant 0 : index
    %197 = vector.load %arg4[%c0_62, %c0_63] : memref<1x64xf32, #tpu.memory_space<vmem>>, vector<1x64xf32>
    %198 = vector.broadcast %197 : vector<1x64xf32> to vector<32x64xf32>
    %199 = arith.addf %196, %198 : vector<32x64xf32>
    %200 = vector.shape_cast %199 : vector<32x64xf32> to vector<2x16x64xf32>
    %c0_64 = arith.constant 0 : index
    %c0_65 = arith.constant 0 : index
    %c0_66 = arith.constant 0 : index
    %201 = vector.load %arg6[%c0_64, %c0_65, %c0_66] : memref<2x16x64xf32, #tpu.memory_space<vmem>>, vector<2x16x64xf32>
    tpu.vector_store %arg6[%c0_64, %c0_65, %c0_66], %200 {strides = array<i32>} : memref<2x16x64xf32, #tpu.memory_space<vmem>>, vector<2x16x64xf32>,
    return
  }
  func.func @transform_0(%arg0: i32) -> (i32, i32, i32) {
    %c0_i32 = arith.constant 0 : i32
    %c0_i32_0 = arith.constant 0 : i32
    %c0_i32_1 = arith.constant 0 : i32
    return %arg0, %c0_i32, %c0_i32_0 : i32, i32, i32
  }
  func.func @transform_1(%arg0: i32) -> (i32, i32) {
    %c0_i32 = arith.constant 0 : i32
    %c0_i32_0 = arith.constant 0 : i32
    %c0_i32_1 = arith.constant 0 : i32
    return %c0_i32, %c0_i32_0 : i32, i32
  }
  func.func @transform_2(%arg0: i32) -> (i32, i32) {
    %c0_i32 = arith.constant 0 : i32
    %c0_i32_0 = arith.constant 0 : i32
    %c0_i32_1 = arith.constant 0 : i32
    return %c0_i32, %c0_i32_0 : i32, i32
  }
  func.func @transform_3(%arg0: i32) -> (i32, i32) {
    %c0_i32 = arith.constant 0 : i32
    %c0_i32_0 = arith.constant 0 : i32
    %c0_i32_1 = arith.constant 0 : i32
    return %c0_i32, %c0_i32_0 : i32, i32
  }
  func.func @transform_4(%arg0: i32) -> (i32, i32, i32) {
    %c0_i32 = arith.constant 0 : i32
    %c0_i32_0 = arith.constant 0 : i32
    %c0_i32_1 = arith.constant 0 : i32
    return %arg0, %c0_i32, %c0_i32_0 : i32, i32, i32
  }
  func.func @transform_5(%arg0: i32) -> (i32, i32, i32) {
    %c0_i32 = arith.constant 0 : i32
    %c0_i32_0 = arith.constant 0 : i32
    %c0_i32_1 = arith.constant 0 : i32
    return %arg0, %c0_i32, %c0_i32_0 : i32, i32, i32
  }
}

</mosaic_0001>

<llo_original>
// kernel: tpu_custom_call.1
$region0: #{tpu_custom_call.1}
  #allocation0 [shape = 'u32[]', space=smem, size = 0x4, offset = 0x4, fixed_abs, tag = 'smem constant byte address 0x4 - core index']
  #allocation1 [shape = 'u32[144,128]{1,0:T(1,128)}', space=vmem, size = 0x12000, scoped, tag = 'internal scratch']
  #allocation2 [shape = 'bf16[32,64]{1,0:T(16,128)(2,1)}', space=vmem, size = 0x2000, scoped, tag = 'scratch operand']
  %s0 = inlined_call_operand.hbm [shape: f32[2,16,64], index: 0, kind: input, shape index: {}]
  %s1 = inlined_call_operand.hbm [shape: bf16[64,192], index: 1, kind: input, shape index: {}]
  %s2 = inlined_call_operand.hbm [shape: bf16[64,64], index: 2, kind: input, shape index: {}]
  %s3 = inlined_call_operand.vmem [shape: f32[1,64], index: 3, kind: input, shape index: {}]
  %s4 = inlined_call_operand.vmem [shape: f32[2,1,16], index: 4, kind: input, shape index: {}]
  %s5 = inlined_call_operand.hbm [shape: f32[2,16,64], index: 5, kind: output, shape index: {}]
  %s6 = sld [smem:[#allocation0]]
  $region42: #{tpu_custom_call.1} parent=0
    _
  %s8 = ssub.s32 1, %s6
  %s9 = scalar_select 0, %s8, %s6
  $region1: #{tpu_custom_call.1} parent=0
    #allocation3 [shape = 'u8[16384]{0}', space=vmem, size = 0x4000, scoped, tag = 'input window, operand 0, single buffered']
    #allocation4 [shape = 's32[1]{0}', space=sflag, size = 0x4, scoped, tag = 'scoped memory for tpu_custom_call.1']
    #allocation5 [shape = 's32[1]{0}', space=sflag, size = 0x4, scoped, tag = 'scoped memory for tpu_custom_call.1']
    #allocation6 [shape = 'u8[32768]{0}', space=vmem, size = 0x8000, scoped, tag = 'input window, operand 1, single buffered']
    #allocation7 [shape = 's32[1]{0}', space=sflag, size = 0x4, scoped, tag = 'scoped memory for tpu_custom_call.1']
    #allocation8 [shape = 'u8[16384]{0}', space=vmem, size = 0x4000, scoped, tag = 'input window, operand 2, single buffered']
    #allocation9 [shape = 'u8[16384]{0}', space=vmem, size = 0x4000, scoped, tag = 'output window, operand 0, single buffered']
    %10 = vsyncpa [#allocation4], 0
    %11 = vsyncpa [#allocation7], 0
    %12 = vsyncpa [#allocation5], 0
    // Predicated region
    $region2: #{tpu_custom_call.1} parent=1 // pred_check
      _
    $region3: #{tpu_custom_call.1} parent=1 // pred_check_branch
      %14 = sbr.rel (0) target = $region5
    $region4: #{tpu_custom_call.1} parent=1 // pred_region
      %s16 = ssub.s32 512, 512
      %17 = vsyncadd [#allocation4], %s16
      %s18 = sshll.u32 [#allocation3], 4
      %s19 = int_to_ptr.vmem [resolvable:$true] %s18
      %24 = dma.hbm_to_vmem [thread:$0]  %s0, 512, %s19, [#allocation4], 128, 128, 8
    $region5: #{tpu_custom_call.1} parent=1 // pred_fallthru
      _
    // Predicated region
    $region6: #{tpu_custom_call.1} parent=1 // pred_check
      _
    $region7: #{tpu_custom_call.1} parent=1 // pred_check_branch
      %26 = sbr.rel (0) target = $region9
    $region8: #{tpu_custom_call.1} parent=1 // pred_region
      %s28 = ssub.s32 1024, 1024
      %29 = vsyncadd [#allocation7], %s28
      %s30 = sshll.u32 [#allocation6], 4
      %s31 = int_to_ptr.vmem [resolvable:$true] %s30
      %36 = dma.hbm_to_vmem [thread:$0]  %s1, 1024, %s31, [#allocation7], 128, 128, 8
    $region9: #{tpu_custom_call.1} parent=1 // pred_fallthru
      _
    // Predicated region
    $region10: #{tpu_custom_call.1} parent=1 // pred_check
      _
    $region11: #{tpu_custom_call.1} parent=1 // pred_check_branch
      %38 = sbr.rel (0) target = $region13
    $region12: #{tpu_custom_call.1} parent=1 // pred_region
      %s40 = ssub.s32 512, 512
      %41 = vsyncadd [#allocation7], %s40
      %s42 = sshll.u32 [#allocation8], 4
      %s43 = int_to_ptr.vmem [resolvable:$true] %s42
      %48 = dma.hbm_to_vmem [thread:$0]  %s2, 512, %s43, [#allocation7], 64, 64, 4
    $region13: #{tpu_custom_call.1} parent=1 // pred_fallthru
      _
    // Predicated region
    $region14: #{tpu_custom_call.1} parent=1 // pred_check
      _
    $region15: #{tpu_custom_call.1} parent=1 // pred_check_branch
      %50 = sbr.rel (0) target = $region17
    $region16: #{tpu_custom_call.1} parent=1 // pred_region
      _
    $region17: #{tpu_custom_call.1} parent=1 // pred_fallthru
      _
    // Predicated region
    $region18: #{tpu_custom_call.1} parent=1 // pred_check
      _
    $region19: #{tpu_custom_call.1} parent=1 // pred_check_branch
      %52 = sbr.rel (0) target = $region21
    $region20: #{tpu_custom_call.1} parent=1 // pred_region
      _
    $region21: #{tpu_custom_call.1} parent=1 // pred_fallthru
      _
    // Predicated region
    $region22: #{tpu_custom_call.1} parent=1 // pred_check
      _
    $region23: #{tpu_custom_call.1} parent=1 // pred_check_branch
      %54 = sbr.rel (0) target = $region25
    $region24: #{tpu_custom_call.1} parent=1 // pred_region
      %55 = dma.done [#allocation4], 512
    $region25: #{tpu_custom_call.1} parent=1 // pred_fallthru
      _
    // Predicated region
    $region26: #{tpu_custom_call.1} parent=1 // pred_check
      _
    $region27: #{tpu_custom_call.1} parent=1 // pred_check_branch
      %57 = sbr.rel (0) target = $region29
    $region28: #{tpu_custom_call.1} parent=1 // pred_region
      %58 = dma.done [#allocation7], 1024
    $region29: #{tpu_custom_call.1} parent=1 // pred_fallthru
      _
    // Predicated region
    $region30: #{tpu_custom_call.1} parent=1 // pred_check
      _
    $region31: #{tpu_custom_call.1} parent=1 // pred_check_branch
      %60 = sbr.rel (0) target = $region33
    $region32: #{tpu_custom_call.1} parent=1 // pred_region
      %61 = dma.done [#allocation7], 512
    $region33: #{tpu_custom_call.1} parent=1 // pred_fallthru
      _
    %v63 = vld [vmem:[#allocation3] sm:$0xff]
    %v64 = vld [vmem:[#allocation3 + $0x8] sm:$0xff]
    %v65 = vld [vmem:[#allocation3 + $0x10] sm:$0xff]
    %v66 = vld [vmem:[#allocation3 + $0x18] sm:$0xff]
    %v67 = vpack.c.bf16 %v64, %v63
    %v68 = vpack.c.bf16 %v66, %v65
    %v69 = vld [vmem:[#allocation6] sm:$0xff]
    %v70 = vld [vmem:[#allocation6 + $0x8] sm:$0xff]
    %v71 = vld [vmem:[#allocation6 + $0x10] sm:$0xff]
    %v72 = vld [vmem:[#allocation6 + $0x18] sm:$0xff]
    %v73 = vld [vmem:[#allocation6 + $0x20] sm:$0xff]
    %v74 = vld [vmem:[#allocation6 + $0x28] sm:$0xff]
    %v75 = vld [vmem:[#allocation6 + $0x30] sm:$0xff]
    %v76 = vld [vmem:[#allocation6 + $0x38] sm:$0xff]
    %v85 = vunpack.c.l.b16 %v69
    %v86 = vunpack.c.h.b16 %v69
    %v87 = vunpack.c.l.b16 %v70
    %v88 = vunpack.c.h.b16 %v70
    %v89 = vunpack.c.l.b16 %v71
    %v90 = vunpack.c.h.b16 %v71
    %v91 = vunpack.c.l.b16 %v72
    %v92 = vunpack.c.h.b16 %v72
    %v93 = vunpack.c.l.b16 %v73
    %v94 = vunpack.c.h.b16 %v73
    %v95 = vunpack.c.l.b16 %v74
    %v96 = vunpack.c.h.b16 %v74
    %v97 = vunpack.c.l.b16 %v75
    %v98 = vunpack.c.h.b16 %v75
    %v99 = vunpack.c.l.b16 %v76
    %v100 = vunpack.c.h.b16 %v76
    %v101 = vpack.c.b16 %v87, %v85
    %v102 = vpack.c.b16 %v88, %v86
    %v103 = vpack.c.b16 %v91, %v89
    %v104 = vpack.c.b16 %v92, %v90
    %v105 = vpack.c.b16 %v95, %v93
    %v106 = vpack.c.b16 %v96, %v94
    %v107 = vpack.c.b16 %v99, %v97
    %v108 = vpack.c.b16 %v100, %v98
    %vm117 = vcmask 523264
    %v119 = vsel %vm117, %v67, 0
    %v122 = vsel %vm117, %v68, 0
    %124 = vmatprep.subr.bf16.mxu0 %v102
    %125 = vmatpush1.bf16.msra.mxu0 %v101
    %126 = vmatprep.subr.bf16.mxu0 %v104
    %127 = vmatpush1.bf16.msra.mxu0 %v103
    %128 = vmatprep.subr.bf16.mxu0 %v106
    %129 = vmatpush1.bf16.msra.mxu0 %v105
    %130 = vmatprep.subr.bf16.mxu0 %v108
    %131 = vmatpush1.bf16.msra.mxu0 %v107
    %132 = vmatprep.subr.bf16.mxu0 0
    %133 = vmatpush1.bf16.msra.mxu0 0
    %134 = vmatprep.subr.bf16.mxu0 0
    %135 = vmatpush1.bf16.msra.mxu0 0
    %136 = vmatprep.subr.bf16.mxu0 0
    %137 = vmatpush1.bf16.msra.mxu0 0
    %138 = vmatprep.subr.bf16.mxu0 0
    %139 = vmatpush1.bf16.msra.mxu0 0
    %140 = vmatprep.subr.bf16.mxu0 0
    %141 = vmatpush1.bf16.msra.mxu0 0
    %142 = vmatprep.subr.bf16.mxu0 0
    %143 = vmatpush1.bf16.msra.mxu0 0
    %144 = vmatprep.subr.bf16.mxu0 0
    %145 = vmatpush1.bf16.msra.mxu0 0
    %146 = vmatprep.subr.bf16.mxu0 0
    %147 = vmatpush1.bf16.msra.mxu0 0
    %148 = vmatprep.subr.bf16.mxu0 0
    %149 = vmatpush1.bf16.msra.mxu0 0
    %150 = vmatprep.subr.bf16.mxu0 0
    %151 = vmatpush1.bf16.msra.mxu0 0
    %152 = vmatprep.subr.bf16.mxu0 0
    %153 = vmatpush1.bf16.msra.mxu0 0
    %154 = vmatprep.subr.bf16.mxu0 0
    %155 = vmatpush1.bf16.msra.mxu0 0
    %156 = vmatprep.mubr.bf16.mxu0 0
    %157 = vmatmul.mubr.bf16.gmra.mrb[0].mxu0 %v119
    %v158 = vpop.f32.mrb[0].mxu0
    %v159 = vadd.f32 0.0, %v158
    %v160 = vpop.f32.mrb[0].mxu0
    %v161 = vadd.f32 0.0, %v160
    %v162 = vpop.f32.mrb[0].mxu0
    %v163 = vadd.f32 0.0, %v162
    %v164 = vpop.f32.mrb[0].mxu0
    %v165 = vadd.f32 0.0, %v164
    %166 = vmatprep.mubr.bf16.mxu0 0
    %167 = vmatmul.mubr.bf16.gmra.mrb[0].mxu0 %v122
    %v168 = vpop.f32.mrb[0].mxu0
    %v169 = vadd.f32 0.0, %v168
    %v170 = vpop.f32.mrb[0].mxu0
    %v171 = vadd.f32 0.0, %v170
    %v172 = vpop.f32.mrb[0].mxu0
    %v173 = vadd.f32 0.0, %v172
    %v174 = vpop.f32.mrb[0].mxu0
    %v175 = vadd.f32 0.0, %v174
    %176 = vdwg.mxu0
    %v177 = vpack.c.bf16 %v163, %v159
    %v178 = vpack.c.bf16 %v165, %v161
    %v179 = vpack.c.bf16 %v173, %v169
    %v180 = vpack.c.bf16 %v175, %v171
    %v181 = vld [vmem:[%s4] sm:$0x1]
    %v182 = vld [vmem:[%s4 + $0x1] sm:$0x1]
    %v183 = vmul.f32 %v181, -1000.0
    %v184 = vmul.f32 %v182, -1000.0
    %186 = vrot.lane.b32.xlu0 %v177, 64
    %v187 = vpop.permute.xlu0 %186
    %vm188 = vcmask 64512
    %v190 = vsel %vm188, %v177, 0
    %v193 = vsel %vm188, %v187, 0
    %195 = vmatprep.subr.bf16.mxu0 0
    %196 = vmatpush1.bf16.xpose.msra.mxu0 %v193
    %197 = vmatprep.subr.bf16.mxu0 0
    %198 = vmatpush1.bf16.xpose.msra.mxu0 0
    %199 = vmatprep.subr.bf16.mxu0 0
    %200 = vmatpush1.bf16.xpose.msra.mxu0 0
    %201 = vmatprep.subr.bf16.mxu0 0
    %202 = vmatpush1.bf16.xpose.msra.mxu0 0
    %203 = vmatprep.subr.bf16.mxu0 0
    %204 = vmatpush1.bf16.xpose.msra.mxu0 0
    %205 = vmatprep.subr.bf16.mxu0 0
    %206 = vmatpush1.bf16.xpose.msra.mxu0 0
    %207 = vmatprep.subr.bf16.mxu0 0
    %208 = vmatpush1.bf16.xpose.msra.mxu0 0
    %209 = vmatprep.subr.bf16.mxu0 0
    %210 = vmatpush1.bf16.xpose.msra.mxu0 0
    %211 = vmatprep.subr.bf16.mxu0 0
    %212 = vmatpush1.bf16.xpose.msra.mxu0 0
    %213 = vmatprep.subr.bf16.mxu0 0
    %214 = vmatpush1.bf16.xpose.msra.mxu0 0
    %215 = vmatprep.subr.bf16.mxu0 0
    %216 = vmatpush1.bf16.xpose.msra.mxu0 0
    %217 = vmatprep.subr.bf16.mxu0 0
    %218 = vmatpush1.bf16.xpose.msra.mxu0 0
    %219 = vmatprep.subr.bf16.mxu0 0
    %220 = vmatpush1.bf16.xpose.msra.mxu0 0
    %221 = vmatprep.subr.bf16.mxu0 0
    %222 = vmatpush1.bf16.xpose.msra.mxu0 0
    %223 = vmatprep.subr.bf16.mxu0 0
    %224 = vmatpush1.bf16.xpose.msra.mxu0 0
    %225 = vmatprep.subr.bf16.mxu0 0
    %226 = vmatpush1.bf16.xpose.msra.mxu0 0
    %227 = vmatprep.mubr.bf16.mxu0 0
    %228 = vmatmul.mubr.bf16.gmra.mrb[0].mxu0 %v190
    %v229 = vpop.f32.mrb[0].mxu0
    %v230 = vadd.f32 0.0, %v229
    %v231 = vpop.f32.mrb[0].mxu0
    %v232 = vpop.f32.mrb[0].mxu0
    %v233 = vadd.f32 0.0, %v232
    %v234 = vpop.f32.mrb[0].mxu0
    %235 = vdwg.mxu0
    %237 = vrot.lane.b32.xlu0 %v179, 64
    %v238 = vpop.permute.xlu0 %237
    %v240 = vsel %vm188, %v179, 0
    %v243 = vsel %vm188, %v238, 0
    %245 = vmatprep.subr.bf16.mxu0 0
    %246 = vmatpush1.bf16.xpose.msra.mxu0 %v243
    %247 = vmatprep.subr.bf16.mxu0 0
    %248 = vmatpush1.bf16.xpose.msra.mxu0 0
    %249 = vmatprep.subr.bf16.mxu0 0
    %250 = vmatpush1.bf16.xpose.msra.mxu0 0
    %251 = vmatprep.subr.bf16.mxu0 0
    %252 = vmatpush1.bf16.xpose.msra.mxu0 0
    %253 = vmatprep.subr.bf16.mxu0 0
    %254 = vmatpush1.bf16.xpose.msra.mxu0 0
    %255 = vmatprep.subr.bf16.mxu0 0
    %256 = vmatpush1.bf16.xpose.msra.mxu0 0
    %257 = vmatprep.subr.bf16.mxu0 0
    %258 = vmatpush1.bf16.xpose.msra.mxu0 0
    %259 = vmatprep.subr.bf16.mxu0 0
    %260 = vmatpush1.bf16.xpose.msra.mxu0 0
    %261 = vmatprep.subr.bf16.mxu0 0
    %262 = vmatpush1.bf16.xpose.msra.mxu0 0
    %263 = vmatprep.subr.bf16.mxu0 0
    %264 = vmatpush1.bf16.xpose.msra.mxu0 0
    %265 = vmatprep.subr.bf16.mxu0 0
    %266 = vmatpush1.bf16.xpose.msra.mxu0 0
    %267 = vmatprep.subr.bf16.mxu0 0
    %268 = vmatpush1.bf16.xpose.msra.mxu0 0
    %269 = vmatprep.subr.bf16.mxu0 0
    %270 = vmatpush1.bf16.xpose.msra.mxu0 0
    %271 = vmatprep.subr.bf16.mxu0 0
    %272 = vmatpush1.bf16.xpose.msra.mxu0 0
    %273 = vmatprep.subr.bf16.mxu0 0
    %274 = vmatpush1.bf16.xpose.msra.mxu0 0
    %275 = vmatprep.subr.bf16.mxu0 0
    %276 = vmatpush1.bf16.xpose.msra.mxu0 0
    %277 = vmatprep.mubr.bf16.mxu0 0
    %278 = vmatmul.mubr.bf16.gmra.mrb[0].mxu0 %v240
    %v279 = vpop.f32.mrb[0].mxu0
    %v280 = vadd.f32 0.0, %v279
    %v281 = vpop.f32.mrb[0].mxu0
    %v282 = vpop.f32.mrb[0].mxu0
    %v283 = vadd.f32 0.0, %v282
    %v284 = vpop.f32.mrb[0].mxu0
    %285 = vdwg.mxu0
    %v286 = vmul.f32 %v230, 0.35355338
    %v287 = vmul.f32 %v233, 0.35355338
    %v288 = vmul.f32 %v280, 0.35355338
    %v289 = vmul.f32 %v283, 0.35355338
    %v292 = vlaneseq
    %v293 = vshrl.u32 %v292, 7
    %v294 = vsub.s32 0, %v293
    %v295 = vrot.slane %v183, %v294
    %v296 = vlaneseq
    %v297 = vshrl.u32 %v296, 7
    %v298 = vsub.s32 0, %v297
    %v299 = vrot.slane %v184, %v298
    %v302 = vadd.f32 %v286, %v295
    %v303 = vadd.f32 %v287, %v295
    %v304 = vadd.f32 %v288, %v299
    %v305 = vadd.f32 %v289, %v299
    %vm306 = vcmask 130048
    %v307 = vsel %vm306, %v302, -inf
    %308 = vmax.xlane.f32.xlu0 %v307
    %v309 = vpop.xlane.xlu0 %308
    %v310 = vsel %vm306, %v303, -inf
    %311 = vmax.xlane.f32.xlu0 %v310
    %v312 = vpop.xlane.xlu0 %311
    %v313 = vsel %vm306, %v304, -inf
    %314 = vmax.xlane.f32.xlu0 %v313
    %v315 = vpop.xlane.xlu0 %314
    %v316 = vsel %vm306, %v305, -inf
    %317 = vmax.xlane.f32.xlu0 %v316
    %v318 = vpop.xlane.xlu0 %317
    %v319 = vsub.f32 %v302, %v309
    %v320 = vsub.f32 %v303, %v312
    %v321 = vsub.f32 %v304, %v315
    %v322 = vsub.f32 %v305, %v318
    %v323 = vmul.f32 %v319, 1.442695
    %v324 = vpow.pop %v323
    %v325 = vmul.f32 %v320, 1.442695
    %v326 = vpow.pop %v325
    %v327 = vmul.f32 %v321, 1.442695
    %v328 = vpow.pop %v327
    %v329 = vmul.f32 %v322, 1.442695
    %v330 = vpow.pop %v329
    %v331 = vsel %vm306, %v324, 0.0
    %332 = vadd.xlane.f32.xlu0 %v331
    %v333 = vpop.xlane.xlu0 %332
    %v334 = vsel %vm306, %v326, 0.0
    %335 = vadd.xlane.f32.xlu0 %v334
    %v336 = vpop.xlane.xlu0 %335
    %v337 = vsel %vm306, %v328, 0.0
    %338 = vadd.xlane.f32.xlu0 %v337
    %v339 = vpop.xlane.xlu0 %338
    %v340 = vsel %vm306, %v330, 0.0
    %341 = vadd.xlane.f32.xlu0 %v340
    %v342 = vpop.xlane.xlu0 %341
    %v343 = vrcp.pop %v333
    %v344 = vrcp.pop %v336
    %v345 = vrcp.pop %v339
    %v346 = vrcp.pop %v342
    %v347 = vmul.f32 %v324, %v343
    %v348 = vmul.f32 %v326, %v344
    %v349 = vmul.f32 %v328, %v345
    %v350 = vmul.f32 %v330, %v346
    %v351 = vpack.c.bf16 %v348, %v347
    %v352 = vpack.c.bf16 %v350, %v349
    %v354 = vsel %vm306, %v351, 0
    %356 = vmatprep.subr.bf16.mxu0 0
    %357 = vmatpush1.bf16.msra.mxu0 %v178
    %358 = vmatprep.subr.bf16.mxu0 0
    %359 = vmatpush1.bf16.msra.mxu0 0
    %360 = vmatprep.subr.bf16.mxu0 0
    %361 = vmatpush1.bf16.msra.mxu0 0
    %362 = vmatprep.subr.bf16.mxu0 0
    %363 = vmatpush1.bf16.msra.mxu0 0
    %364 = vmatprep.subr.bf16.mxu0 0
    %365 = vmatpush1.bf16.msra.mxu0 0
    %366 = vmatprep.subr.bf16.mxu0 0
    %367 = vmatpush1.bf16.msra.mxu0 0
    %368 = vmatprep.subr.bf16.mxu0 0
    %369 = vmatpush1.bf16.msra.mxu0 0
    %370 = vmatprep.subr.bf16.mxu0 0
    %371 = vmatpush1.bf16.msra.mxu0 0
    %372 = vmatprep.subr.bf16.mxu0 0
    %373 = vmatpush1.bf16.msra.mxu0 0
    %374 = vmatprep.subr.bf16.mxu0 0
    %375 = vmatpush1.bf16.msra.mxu0 0
    %376 = vmatprep.subr.bf16.mxu0 0
    %377 = vmatpush1.bf16.msra.mxu0 0
    %378 = vmatprep.subr.bf16.mxu0 0
    %379 = vmatpush1.bf16.msra.mxu0 0
    %380 = vmatprep.subr.bf16.mxu0 0
    %381 = vmatpush1.bf16.msra.mxu0 0
    %382 = vmatprep.subr.bf16.mxu0 0
    %383 = vmatpush1.bf16.msra.mxu0 0
    %384 = vmatprep.subr.bf16.mxu0 0
    %385 = vmatpush1.bf16.msra.mxu0 0
    %386 = vmatprep.subr.bf16.mxu0 0
    %387 = vmatpush1.bf16.msra.mxu0 0
    %388 = vmatprep.mubr.bf16.mxu0 0
    %389 = vmatmul.mubr.bf16.gmra.mrb[0].mxu0 %v354
    %v390 = vpop.f32.mrb[0].mxu0
    %v391 = vadd.f32 0.0, %v390
    %v392 = vpop.f32.mrb[0].mxu0
    %v393 = vpop.f32.mrb[0].mxu0
    %v394 = vadd.f32 0.0, %v393
    %v395 = vpop.f32.mrb[0].mxu0
    %396 = vdwg.mxu0
    %v398 = vsel %vm306, %v352, 0
    %400 = vmatprep.subr.bf16.mxu0 0
    %401 = vmatpush1.bf16.msra.mxu0 %v180
    %402 = vmatprep.subr.bf16.mxu0 0
    %403 = vmatpush1.bf16.msra.mxu0 0
    %404 = vmatprep.subr.bf16.mxu0 0
    %405 = vmatpush1.bf16.msra.mxu0 0
    %406 = vmatprep.subr.bf16.mxu0 0
    %407 = vmatpush1.bf16.msra.mxu0 0
    %408 = vmatprep.subr.bf16.mxu0 0
    %409 = vmatpush1.bf16.msra.mxu0 0
    %410 = vmatprep.subr.bf16.mxu0 0
    %411 = vmatpush1.bf16.msra.mxu0 0
    %412 = vmatprep.subr.bf16.mxu0 0
    %413 = vmatpush1.bf16.msra.mxu0 0
    %414 = vmatprep.subr.bf16.mxu0 0
    %415 = vmatpush1.bf16.msra.mxu0 0
    %416 = vmatprep.subr.bf16.mxu0 0
    %417 = vmatpush1.bf16.msra.mxu0 0
    %418 = vmatprep.subr.bf16.mxu0 0
    %419 = vmatpush1.bf16.msra.mxu0 0
    %420 = vmatprep.subr.bf16.mxu0 0
    %421 = vmatpush1.bf16.msra.mxu0 0
    %422 = vmatprep.subr.bf16.mxu0 0
    %423 = vmatpush1.bf16.msra.mxu0 0
    %424 = vmatprep.subr.bf16.mxu0 0
    %425 = vmatpush1.bf16.msra.mxu0 0
    %426 = vmatprep.subr.bf16.mxu0 0
    %427 = vmatpush1.bf16.msra.mxu0 0
    %428 = vmatprep.subr.bf16.mxu0 0
    %429 = vmatpush1.bf16.msra.mxu0 0
    %430 = vmatprep.subr.bf16.mxu0 0
    %431 = vmatpush1.bf16.msra.mxu0 0
    %432 = vmatprep.mubr.bf16.mxu0 0
    %433 = vmatmul.mubr.bf16.gmra.mrb[0].mxu0 %v398
    %v434 = vpop.f32.mrb[0].mxu0
    %v435 = vadd.f32 0.0, %v434
    %v436 = vpop.f32.mrb[0].mxu0
    %v437 = vpop.f32.mrb[0].mxu0
    %v438 = vadd.f32 0.0, %v437
    %v439 = vpop.f32.mrb[0].mxu0
    %440 = vdwg.mxu0
    %v441 = vpack.c.bf16 %v394, %v391
    %v442 = vpack.c.bf16 %v438, %v435
    %443 = vst.msk [vmem:[#allocation2] sm:$0xff] %vm188, %v441
    %444 = vst.msk [vmem:[#allocation2 + $0x8] sm:$0xff] %vm188, %v442
    %445 = vrot.lane.b32.xlu0 %v177, 120
    %v446 = vpop.permute.xlu0 %445
    %447 = vrot.lane.b32.xlu0 %v177, 56
    %v448 = vpop.permute.xlu0 %447
    %v450 = vsel %vm188, %v446, 0
    %v453 = vsel %vm188, %v448, 0
    %455 = vmatprep.subr.bf16.mxu0 0
    %456 = vmatpush1.bf16.xpose.msra.mxu0 %v453
    %457 = vmatprep.subr.bf16.mxu0 0
    %458 = vmatpush1.bf16.xpose.msra.mxu0 0
    %459 = vmatprep.subr.bf16.mxu0 0
    %460 = vmatpush1.bf16.xpose.msra.mxu0 0
    %461 = vmatprep.subr.bf16.mxu0 0
    %462 = vmatpush1.bf16.xpose.msra.mxu0 0
    %463 = vmatprep.subr.bf16.mxu0 0
    %464 = vmatpush1.bf16.xpose.msra.mxu0 0
    %465 = vmatprep.subr.bf16.mxu0 0
    %466 = vmatpush1.bf16.xpose.msra.mxu0 0
    %467 = vmatprep.subr.bf16.mxu0 0
    %468 = vmatpush1.bf16.xpose.msra.mxu0 0
    %469 = vmatprep.subr.bf16.mxu0 0
    %470 = vmatpush1.bf16.xpose.msra.mxu0 0
    %471 = vmatprep.subr.bf16.mxu0 0
    %472 = vmatpush1.bf16.xpose.msra.mxu0 0
    %473 = vmatprep.subr.bf16.mxu0 0
    %474 = vmatpush1.bf16.xpose.msra.mxu0 0
    %475 = vmatprep.subr.bf16.mxu0 0
    %476 = vmatpush1.bf16.xpose.msra.mxu0 0
    %477 = vmatprep.subr.bf16.mxu0 0
    %478 = vmatpush1.bf16.xpose.msra.mxu0 0
    %479 = vmatprep.subr.bf16.mxu0 0
    %480 = vmatpush1.bf16.xpose.msra.mxu0 0
    %481 = vmatprep.subr.bf16.mxu0 0
    %482 = vmatpush1.bf16.xpose.msra.mxu0 0
    %483 = vmatprep.subr.bf16.mxu0 0
    %484 = vmatpush1.bf16.xpose.msra.mxu0 0
    %485 = vmatprep.subr.bf16.mxu0 0
    %486 = vmatpush1.bf16.xpose.msra.mxu0 0
    %487 = vmatprep.mubr.bf16.mxu0 0
    %488 = vmatmul.mubr.bf16.gmra.mrb[0].mxu0 %v450
    %v489 = vpop.f32.mrb[0].mxu0
    %v490 = vadd.f32 0.0, %v489
    %v491 = vpop.f32.mrb[0].mxu0
    %v492 = vpop.f32.mrb[0].mxu0
    %v493 = vadd.f32 0.0, %v492
    %v494 = vpop.f32.mrb[0].mxu0
    %495 = vdwg.mxu0
    %496 = vrot.lane.b32.xlu0 %v179, 120
    %v497 = vpop.permute.xlu0 %496
    %498 = vrot.lane.b32.xlu0 %v179, 56
    %v499 = vpop.permute.xlu0 %498
    %v501 = vsel %vm188, %v497, 0
    %v504 = vsel %vm188, %v499, 0
    %506 = vmatprep.subr.bf16.mxu0 0
    %507 = vmatpush1.bf16.xpose.msra.mxu0 %v504
    %508 = vmatprep.subr.bf16.mxu0 0
    %509 = vmatpush1.bf16.xpose.msra.mxu0 0
    %510 = vmatprep.subr.bf16.mxu0 0
    %511 = vmatpush1.bf16.xpose.msra.mxu0 0
    %512 = vmatprep.subr.bf16.mxu0 0
    %513 = vmatpush1.bf16.xpose.msra.mxu0 0
    %514 = vmatprep.subr.bf16.mxu0 0
    %515 = vmatpush1.bf16.xpose.msra.mxu0 0
    %516 = vmatprep.subr.bf16.mxu0 0
    %517 = vmatpush1.bf16.xpose.msra.mxu0 0
    %518 = vmatprep.subr.bf16.mxu0 0
    %519 = vmatpush1.bf16.xpose.msra.mxu0 0
    %520 = vmatprep.subr.bf16.mxu0 0
    %521 = vmatpush1.bf16.xpose.msra.mxu0 0
    %522 = vmatprep.subr.bf16.mxu0 0
    %523 = vmatpush1.bf16.xpose.msra.mxu0 0
    %524 = vmatprep.subr.bf16.mxu0 0
    %525 = vmatpush1.bf16.xpose.msra.mxu0 0
    %526 = vmatprep.subr.bf16.mxu0 0
    %527 = vmatpush1.bf16.xpose.msra.mxu0 0
    %528 = vmatprep.subr.bf16.mxu0 0
    %529 = vmatpush1.bf16.xpose.msra.mxu0 0
    %530 = vmatprep.subr.bf16.mxu0 0
    %531 = vmatpush1.bf16.xpose.msra.mxu0 0
    %532 = vmatprep.subr.bf16.mxu0 0
    %533 = vmatpush1.bf16.xpose.msra.mxu0 0
    %534 = vmatprep.subr.bf16.mxu0 0
    %535 = vmatpush1.bf16.xpose.msra.mxu0 0
    %536 = vmatprep.subr.bf16.mxu0 0
    %537 = vmatpush1.bf16.xpose.msra.mxu0 0
    %538 = vmatprep.mubr.bf16.mxu0 0
    %539 = vmatmul.mubr.bf16.gmra.mrb[0].mxu0 %v501
    %v540 = vpop.f32.mrb[0].mxu0
    %v541 = vadd.f32 0.0, %v540
    %v542 = vpop.f32.mrb[0].mxu0
    %v543 = vpop.f32.mrb[0].mxu0
    %v544 = vadd.f32 0.0, %v543
    %v545 = vpop.f32.mrb[0].mxu0
    %546 = vdwg.mxu0
    %v547 = vmul.f32 %v490, 0.35355338
    %v548 = vmul.f32 %v493, 0.35355338
    %v549 = vmul.f32 %v541, 0.35355338
    %v550 = vmul.f32 %v544, 0.35355338
    %v551 = vadd.f32 %v547, %v295
    %v552 = vadd.f32 %v548, %v295
    %v553 = vadd.f32 %v549, %v299
    %v554 = vadd.f32 %v550, %v299
    %v555 = vsel %vm306, %v551, -inf
    %556 = vmax.xlane.f32.xlu0 %v555
    %v557 = vpop.xlane.xlu0 %556
    %v558 = vsel %vm306, %v552, -inf
    %559 = vmax.xlane.f32.xlu0 %v558
    %v560 = vpop.xlane.xlu0 %559
    %v561 = vsel %vm306, %v553, -inf
    %562 = vmax.xlane.f32.xlu0 %v561
    %v563 = vpop.xlane.xlu0 %562
    %v564 = vsel %vm306, %v554, -inf
    %565 = vmax.xlane.f32.xlu0 %v564
    %v566 = vpop.xlane.xlu0 %565
    %v567 = vsub.f32 %v551, %v557
    %v568 = vsub.f32 %v552, %v560
    %v569 = vsub.f32 %v553, %v563
    %v570 = vsub.f32 %v554, %v566
    %v571 = vmul.f32 %v567, 1.442695
    %v572 = vpow.pop %v571
    %v573 = vmul.f32 %v568, 1.442695
    %v574 = vpow.pop %v573
    %v575 = vmul.f32 %v569, 1.442695
    %v576 = vpow.pop %v575
    %v577 = vmul.f32 %v570, 1.442695
    %v578 = vpow.pop %v577
    %v579 = vsel %vm306, %v572, 0.0
    %580 = vadd.xlane.f32.xlu0 %v579
    %v581 = vpop.xlane.xlu0 %580
    %v582 = vsel %vm306, %v574, 0.0
    %583 = vadd.xlane.f32.xlu0 %v582
    %v584 = vpop.xlane.xlu0 %583
    %v585 = vsel %vm306, %v576, 0.0
    %586 = vadd.xlane.f32.xlu0 %v585
    %v587 = vpop.xlane.xlu0 %586
    %v588 = vsel %vm306, %v578, 0.0
    %589 = vadd.xlane.f32.xlu0 %v588
    %v590 = vpop.xlane.xlu0 %589
    %v591 = vrcp.pop %v581
    %v592 = vrcp.pop %v584
    %v593 = vrcp.pop %v587
    %v594 = vrcp.pop %v590
    %v595 = vmul.f32 %v572, %v591
    %v596 = vmul.f32 %v574, %v592
    %v597 = vmul.f32 %v576, %v593
    %v598 = vmul.f32 %v578, %v594
    %v599 = vpack.c.bf16 %v596, %v595
    %v600 = vpack.c.bf16 %v598, %v597
    %602 = vrot.lane.b32.xlu0 %v178, 120
    %v603 = vpop.permute.xlu0 %602
    %v606 = vsel %vm306, %v599, 0
    %608 = vmatprep.subr.bf16.mxu0 0
    %609 = vmatpush1.bf16.msra.mxu0 %v603
    %610 = vmatprep.subr.bf16.mxu0 0
    %611 = vmatpush1.bf16.msra.mxu0 0
    %612 = vmatprep.subr.bf16.mxu0 0
    %613 = vmatpush1.bf16.msra.mxu0 0
    %614 = vmatprep.subr.bf16.mxu0 0
    %615 = vmatpush1.bf16.msra.mxu0 0
    %616 = vmatprep.subr.bf16.mxu0 0
    %617 = vmatpush1.bf16.msra.mxu0 0
    %618 = vmatprep.subr.bf16.mxu0 0
    %619 = vmatpush1.bf16.msra.mxu0 0
    %620 = vmatprep.subr.bf16.mxu0 0
    %621 = vmatpush1.bf16.msra.mxu0 0
    %622 = vmatprep.subr.bf16.mxu0 0
    %623 = vmatpush1.bf16.msra.mxu0 0
    %624 = vmatprep.subr.bf16.mxu0 0
    %625 = vmatpush1.bf16.msra.mxu0 0
    %626 = vmatprep.subr.bf16.mxu0 0
    %627 = vmatpush1.bf16.msra.mxu0 0
    %628 = vmatprep.subr.bf16.mxu0 0
    %629 = vmatpush1.bf16.msra.mxu0 0
    %630 = vmatprep.subr.bf16.mxu0 0
    %631 = vmatpush1.bf16.msra.mxu0 0
    %632 = vmatprep.subr.bf16.mxu0 0
    %633 = vmatpush1.bf16.msra.mxu0 0
    %634 = vmatprep.subr.bf16.mxu0 0
    %635 = vmatpush1.bf16.msra.mxu0 0
    %636 = vmatprep.subr.bf16.mxu0 0
    %637 = vmatpush1.bf16.msra.mxu0 0
    %638 = vmatprep.subr.bf16.mxu0 0
    %639 = vmatpush1.bf16.msra.mxu0 0
    %640 = vmatprep.mubr.bf16.mxu0 0
    %641 = vmatmul.mubr.bf16.gmra.mrb[0].mxu0 %v606
    %v642 = vpop.f32.mrb[0].mxu0
    %v643 = vadd.f32 0.0, %v642
    %v644 = vpop.f32.mrb[0].mxu0
    %v645 = vpop.f32.mrb[0].mxu0
    %v646 = vadd.f32 0.0, %v645
    %v647 = vpop.f32.mrb[0].mxu0
    %648 = vdwg.mxu0
    %650 = vrot.lane.b32.xlu0 %v180, 120
    %v651 = vpop.permute.xlu0 %650
    %v654 = vsel %vm306, %v600, 0
    %656 = vmatprep.subr.bf16.mxu0 0
    %657 = vmatpush1.bf16.msra.mxu0 %v651
    %658 = vmatprep.subr.bf16.mxu0 0
    %659 = vmatpush1.bf16.msra.mxu0 0
    %660 = vmatprep.subr.bf16.mxu0 0
    %661 = vmatpush1.bf16.msra.mxu0 0
    %662 = vmatprep.subr.bf16.mxu0 0
    %663 = vmatpush1.bf16.msra.mxu0 0
    %664 = vmatprep.subr.bf16.mxu0 0
    %665 = vmatpush1.bf16.msra.mxu0 0
    %666 = vmatprep.subr.bf16.mxu0 0
    %667 = vmatpush1.bf16.msra.mxu0 0
    %668 = vmatprep.subr.bf16.mxu0 0
    %669 = vmatpush1.bf16.msra.mxu0 0
    %670 = vmatprep.subr.bf16.mxu0 0
    %671 = vmatpush1.bf16.msra.mxu0 0
    %672 = vmatprep.subr.bf16.mxu0 0
    %673 = vmatpush1.bf16.msra.mxu0 0
    %674 = vmatprep.subr.bf16.mxu0 0
    %675 = vmatpush1.bf16.msra.mxu0 0
    %676 = vmatprep.subr.bf16.mxu0 0
    %677 = vmatpush1.bf16.msra.mxu0 0
    %678 = vmatprep.subr.bf16.mxu0 0
    %679 = vmatpush1.bf16.msra.mxu0 0
    %680 = vmatprep.subr.bf16.mxu0 0
    %681 = vmatpush1.bf16.msra.mxu0 0
    %682 = vmatprep.subr.bf16.mxu0 0
    %683 = vmatpush1.bf16.msra.mxu0 0
    %684 = vmatprep.subr.bf16.mxu0 0
    %685 = vmatpush1.bf16.msra.mxu0 0
    %686 = vmatprep.subr.bf16.mxu0 0
    %687 = vmatpush1.bf16.msra.mxu0 0
    %688 = vmatprep.mubr.bf16.mxu0 0
    %689 = vmatmul.mubr.bf16.gmra.mrb[0].mxu0 %v654
    %v690 = vpop.f32.mrb[0].mxu0
    %v691 = vadd.f32 0.0, %v690
    %v692 = vpop.f32.mrb[0].mxu0
    %v693 = vpop.f32.mrb[0].mxu0
    %v694 = vadd.f32 0.0, %v693
    %v695 = vpop.f32.mrb[0].mxu0
    %696 = vdwg.mxu0
    %v697 = vpack.c.bf16 %v646, %v643
    %v698 = vpack.c.bf16 %v694, %v691
    %701 = vrot.lane.b32.xlu0 %v697, 8
    %v702 = vpop.permute.xlu0 %701
    %703 = vrot.lane.b32.xlu0 %v698, 8
    %v704 = vpop.permute.xlu0 %703
    %vm707 = vcmask 130112
    %708 = vst.msk [vmem:[#allocation2] sm:$0xff] %vm707, %v702
    %709 = vst.msk [vmem:[#allocation2 + $0x8] sm:$0xff] %vm707, %v704
    %710 = vrot.lane.b32.xlu0 %v177, 112
    %v711 = vpop.permute.xlu0 %710
    %712 = vrot.lane.b32.xlu0 %v177, 48
    %v713 = vpop.permute.xlu0 %712
    %v715 = vsel %vm188, %v711, 0
    %v718 = vsel %vm188, %v713, 0
    %720 = vmatprep.subr.bf16.mxu0 0
    %721 = vmatpush1.bf16.xpose.msra.mxu0 %v718
    %722 = vmatprep.subr.bf16.mxu0 0
    %723 = vmatpush1.bf16.xpose.msra.mxu0 0
    %724 = vmatprep.subr.bf16.mxu0 0
    %725 = vmatpush1.bf16.xpose.msra.mxu0 0
    %726 = vmatprep.subr.bf16.mxu0 0
    %727 = vmatpush1.bf16.xpose.msra.mxu0 0
    %728 = vmatprep.subr.bf16.mxu0 0
    %729 = vmatpush1.bf16.xpose.msra.mxu0 0
    %730 = vmatprep.subr.bf16.mxu0 0
    %731 = vmatpush1.bf16.xpose.msra.mxu0 0
    %732 = vmatprep.subr.bf16.mxu0 0
    %733 = vmatpush1.bf16.xpose.msra.mxu0 0
    %734 = vmatprep.subr.bf16.mxu0 0
    %735 = vmatpush1.bf16.xpose.msra.mxu0 0
    %736 = vmatprep.subr.bf16.mxu0 0
    %737 = vmatpush1.bf16.xpose.msra.mxu0 0
    %738 = vmatprep.subr.bf16.mxu0 0
    %739 = vmatpush1.bf16.xpose.msra.mxu0 0
    %740 = vmatprep.subr.bf16.mxu0 0
    %741 = vmatpush1.bf16.xpose.msra.mxu0 0
    %742 = vmatprep.subr.bf16.mxu0 0
    %743 = vmatpush1.bf16.xpose.msra.mxu0 0
    %744 = vmatprep.subr.bf16.mxu0 0
    %745 = vmatpush1.bf16.xpose.msra.mxu0 0
    %746 = vmatprep.subr.bf16.mxu0 0
    %747 = vmatpush1.bf16.xpose.msra.mxu0 0
    %748 = vmatprep.subr.bf16.mxu0 0
    %749 = vmatpush1.bf16.xpose.msra.mxu0 0
    %750 = vmatprep.subr.bf16.mxu0 0
    %751 = vmatpush1.bf16.xpose.msra.mxu0 0
    %752 = vmatprep.mubr.bf16.mxu0 0
    %753 = vmatmul.mubr.bf16.gmra.mrb[0].mxu0 %v715
    %v754 = vpop.f32.mrb[0].mxu0
    %v755 = vadd.f32 0.0, %v754
    %v756 = vpop.f32.mrb[0].mxu0
    %v757 = vpop.f32.mrb[0].mxu0
    %v758 = vadd.f32 0.0, %v757
    %v759 = vpop.f32.mrb[0].mxu0
    %760 = vdwg.mxu0
    %761 = vrot.lane.b32.xlu0 %v179, 112
    %v762 = vpop.permute.xlu0 %761
    %763 = vrot.lane.b32.xlu0 %v179, 48
    %v764 = vpop.permute.xlu0 %763
    %v766 = vsel %vm188, %v762, 0
    %v769 = vsel %vm188, %v764, 0
    %771 = vmatprep.subr.bf16.mxu0 0
    %772 = vmatpush1.bf16.xpose.msra.mxu0 %v769
    %773 = vmatprep.subr.bf16.mxu0 0
    %774 = vmatpush1.bf16.xpose.msra.mxu0 0
    %775 = vmatprep.subr.bf16.mxu0 0
    %776 = vmatpush1.bf16.xpose.msra.mxu0 0
    %777 = vmatprep.subr.bf16.mxu0 0
    %778 = vmatpush1.bf16.xpose.msra.mxu0 0
    %779 = vmatprep.subr.bf16.mxu0 0
    %780 = vmatpush1.bf16.xpose.msra.mxu0 0
    %781 = vmatprep.subr.bf16.mxu0 0
    %782 = vmatpush1.bf16.xpose.msra.mxu0 0
    %783 = vmatprep.subr.bf16.mxu0 0
    %784 = vmatpush1.bf16.xpose.msra.mxu0 0
    %785 = vmatprep.subr.bf16.mxu0 0
    %786 = vmatpush1.bf16.xpose.msra.mxu0 0
    %787 = vmatprep.subr.bf16.mxu0 0
    %788 = vmatpush1.bf16.xpose.msra.mxu0 0
    %789 = vmatprep.subr.bf16.mxu0 0
    %790 = vmatpush1.bf16.xpose.msra.mxu0 0
    %791 = vmatprep.subr.bf16.mxu0 0
    %792 = vmatpush1.bf16.xpose.msra.mxu0 0
    %793 = vmatprep.subr.bf16.mxu0 0
    %794 = vmatpush1.bf16.xpose.msra.mxu0 0
    %795 = vmatprep.subr.bf16.mxu0 0
    %796 = vmatpush1.bf16.xpose.msra.mxu0 0
    %797 = vmatprep.subr.bf16.mxu0 0
    %798 = vmatpush1.bf16.xpose.msra.mxu0 0
    %799 = vmatprep.subr.bf16.mxu0 0
    %800 = vmatpush1.bf16.xpose.msra.mxu0 0
    %801 = vmatprep.subr.bf16.mxu0 0
    %802 = vmatpush1.bf16.xpose.msra.mxu0 0
    %803 = vmatprep.mubr.bf16.mxu0 0
    %804 = vmatmul.mubr.bf16.gmra.mrb[0].mxu0 %v766
    %v805 = vpop.f32.mrb[0].mxu0
    %v806 = vadd.f32 0.0, %v805
    %v807 = vpop.f32.mrb[0].mxu0
    %v808 = vpop.f32.mrb[0].mxu0
    %v809 = vadd.f32 0.0, %v808
    %v810 = vpop.f32.mrb[0].mxu0
    %811 = vdwg.mxu0
    %v812 = vmul.f32 %v755, 0.35355338
    %v813 = vmul.f32 %v758, 0.35355338
    %v814 = vmul.f32 %v806, 0.35355338
    %v815 = vmul.f32 %v809, 0.35355338
    %v816 = vadd.f32 %v812, %v295
    %v817 = vadd.f32 %v813, %v295
    %v818 = vadd.f32 %v814, %v299
    %v819 = vadd.f32 %v815, %v299
    %v820 = vsel %vm306, %v816, -inf
    %821 = vmax.xlane.f32.xlu0 %v820
    %v822 = vpop.xlane.xlu0 %821
    %v823 = vsel %vm306, %v817, -inf
    %824 = vmax.xlane.f32.xlu0 %v823
    %v825 = vpop.xlane.xlu0 %824
    %v826 = vsel %vm306, %v818, -inf
    %827 = vmax.xlane.f32.xlu0 %v826
    %v828 = vpop.xlane.xlu0 %827
    %v829 = vsel %vm306, %v819, -inf
    %830 = vmax.xlane.f32.xlu0 %v829
    %v831 = vpop.xlane.xlu0 %830
    %v832 = vsub.f32 %v816, %v822
    %v833 = vsub.f32 %v817, %v825
    %v834 = vsub.f32 %v818, %v828
    %v835 = vsub.f32 %v819, %v831
    %v836 = vmul.f32 %v832, 1.442695
    %v837 = vpow.pop %v836
    %v838 = vmul.f32 %v833, 1.442695
    %v839 = vpow.pop %v838
    %v840 = vmul.f32 %v834, 1.442695
    %v841 = vpow.pop %v840
    %v842 = vmul.f32 %v835, 1.442695
    %v843 = vpow.pop %v842
    %v844 = vsel %vm306, %v837, 0.0
    %845 = vadd.xlane.f32.xlu0 %v844
    %v846 = vpop.xlane.xlu0 %845
    %v847 = vsel %vm306, %v839, 0.0
    %848 = vadd.xlane.f32.xlu0 %v847
    %v849 = vpop.xlane.xlu0 %848
    %v850 = vsel %vm306, %v841, 0.0
    %851 = vadd.xlane.f32.xlu0 %v850
    %v852 = vpop.xlane.xlu0 %851
    %v853 = vsel %vm306, %v843, 0.0
    %854 = vadd.xlane.f32.xlu0 %v853
    %v855 = vpop.xlane.xlu0 %854
    %v856 = vrcp.pop %v846
    %v857 = vrcp.pop %v849
    %v858 = vrcp.pop %v852
    %v859 = vrcp.pop %v855
    %v860 = vmul.f32 %v837, %v856
    %v861 = vmul.f32 %v839, %v857
    %v862 = vmul.f32 %v841, %v858
    %v863 = vmul.f32 %v843, %v859
    %v864 = vpack.c.bf16 %v861, %v860
    %v865 = vpack.c.bf16 %v863, %v862
    %866 = vrot.lane.b32.xlu0 %v178, 112
    %v867 = vpop.permute.xlu0 %866
    %v870 = vsel %vm306, %v864, 0
    %872 = vmatprep.subr.bf16.mxu0 0
    %873 = vmatpush1.bf16.msra.mxu0 %v867
    %874 = vmatprep.subr.bf16.mxu0 0
    %875 = vmatpush1.bf16.msra.mxu0 0
    %876 = vmatprep.subr.bf16.mxu0 0
    %877 = vmatpush1.bf16.msra.mxu0 0
    %878 = vmatprep.subr.bf16.mxu0 0
    %879 = vmatpush1.bf16.msra.mxu0 0
    %880 = vmatprep.subr.bf16.mxu0 0
    %881 = vmatpush1.bf16.msra.mxu0 0
    %882 = vmatprep.subr.bf16.mxu0 0
    %883 = vmatpush1.bf16.msra.mxu0 0
    %884 = vmatprep.subr.bf16.mxu0 0
    %885 = vmatpush1.bf16.msra.mxu0 0
    %886 = vmatprep.subr.bf16.mxu0 0
    %887 = vmatpush1.bf16.msra.mxu0 0
    %888 = vmatprep.subr.bf16.mxu0 0
    %889 = vmatpush1.bf16.msra.mxu0 0
    %890 = vmatprep.subr.bf16.mxu0 0
    %891 = vmatpush1.bf16.msra.mxu0 0
    %892 = vmatprep.subr.bf16.mxu0 0
    %893 = vmatpush1.bf16.msra.mxu0 0
    %894 = vmatprep.subr.bf16.mxu0 0
    %895 = vmatpush1.bf16.msra.mxu0 0
    %896 = vmatprep.subr.bf16.mxu0 0
    %897 = vmatpush1.bf16.msra.mxu0 0
    %898 = vmatprep.subr.bf16.mxu0 0
    %899 = vmatpush1.bf16.msra.mxu0 0
    %900 = vmatprep.subr.bf16.mxu0 0
    %901 = vmatpush1.bf16.msra.mxu0 0
    %902 = vmatprep.subr.bf16.mxu0 0
    %903 = vmatpush1.bf16.msra.mxu0 0
    %904 = vmatprep.mubr.bf16.mxu0 0
    %905 = vmatmul.mubr.bf16.gmra.mrb[0].mxu0 %v870
    %v906 = vpop.f32.mrb[0].mxu0
    %v907 = vadd.f32 0.0, %v906
    %v908 = vpop.f32.mrb[0].mxu0
    %v909 = vpop.f32.mrb[0].mxu0
    %v910 = vadd.f32 0.0, %v909
    %v911 = vpop.f32.mrb[0].mxu0
    %912 = vdwg.mxu0
    %913 = vrot.lane.b32.xlu0 %v180, 112
    %v914 = vpop.permute.xlu0 %913
    %v917 = vsel %vm306, %v865, 0
    %919 = vmatprep.subr.bf16.mxu0 0
    %920 = vmatpush1.bf16.msra.mxu0 %v914
    %921 = vmatprep.subr.bf16.mxu0 0
    %922 = vmatpush1.bf16.msra.mxu0 0
    %923 = vmatprep.subr.bf16.mxu0 0
    %924 = vmatpush1.bf16.msra.mxu0 0
    %925 = vmatprep.subr.bf16.mxu0 0
    %926 = vmatpush1.bf16.msra.mxu0 0
    %927 = vmatprep.subr.bf16.mxu0 0
    %928 = vmatpush1.bf16.msra.mxu0 0
    %929 = vmatprep.subr.bf16.mxu0 0
    %930 = vmatpush1.bf16.msra.mxu0 0
    %931 = vmatprep.subr.bf16.mxu0 0
    %932 = vmatpush1.bf16.msra.mxu0 0
    %933 = vmatprep.subr.bf16.mxu0 0
    %934 = vmatpush1.bf16.msra.mxu0 0
    %935 = vmatprep.subr.bf16.mxu0 0
    %936 = vmatpush1.bf16.msra.mxu0 0
    %937 = vmatprep.subr.bf16.mxu0 0
    %938 = vmatpush1.bf16.msra.mxu0 0
    %939 = vmatprep.subr.bf16.mxu0 0
    %940 = vmatpush1.bf16.msra.mxu0 0
    %941 = vmatprep.subr.bf16.mxu0 0
    %942 = vmatpush1.bf16.msra.mxu0 0
    %943 = vmatprep.subr.bf16.mxu0 0
    %944 = vmatpush1.bf16.msra.mxu0 0
    %945 = vmatprep.subr.bf16.mxu0 0
    %946 = vmatpush1.bf16.msra.mxu0 0
    %947 = vmatprep.subr.bf16.mxu0 0
    %948 = vmatpush1.bf16.msra.mxu0 0
    %949 = vmatprep.subr.bf16.mxu0 0
    %950 = vmatpush1.bf16.msra.mxu0 0
    %951 = vmatprep.mubr.bf16.mxu0 0
    %952 = vmatmul.mubr.bf16.gmra.mrb[0].mxu0 %v917
    %v953 = vpop.f32.mrb[0].mxu0
    %v954 = vadd.f32 0.0, %v953
    %v955 = vpop.f32.mrb[0].mxu0
    %v956 = vpop.f32.mrb[0].mxu0
    %v957 = vadd.f32 0.0, %v956
    %v958 = vpop.f32.mrb[0].mxu0
    %959 = vdwg.mxu0
    %v960 = vpack.c.bf16 %v910, %v907
    %v961 = vpack.c.bf16 %v957, %v954
    %964 = vrot.lane.b32.xlu0 %v960, 16
    %v965 = vpop.permute.xlu0 %964
    %966 = vrot.lane.b32.xlu0 %v961, 16
    %v967 = vpop.permute.xlu0 %966
    %vm970 = vcmask 195712
    %971 = vst.msk [vmem:[#allocation2] sm:$0xff] %vm970, %v965
    %972 = vst.msk [vmem:[#allocation2 + $0x8] sm:$0xff] %vm970, %v967
    %973 = vrot.lane.b32.xlu0 %v177, 104
    %v974 = vpop.permute.xlu0 %973
    %975 = vrot.lane.b32.xlu0 %v177, 40
    %v976 = vpop.permute.xlu0 %975
    %v978 = vsel %vm188, %v974, 0
    %v981 = vsel %vm188, %v976, 0
    %983 = vmatprep.subr.bf16.mxu0 0
    %984 = vmatpush1.bf16.xpose.msra.mxu0 %v981
    %985 = vmatprep.subr.bf16.mxu0 0
    %986 = vmatpush1.bf16.xpose.msra.mxu0 0
    %987 = vmatprep.subr.bf16.mxu0 0
    %988 = vmatpush1.bf16.xpose.msra.mxu0 0
    %989 = vmatprep.subr.bf16.mxu0 0
    %990 = vmatpush1.bf16.xpose.msra.mxu0 0
    %991 = vmatprep.subr.bf16.mxu0 0
    %992 = vmatpush1.bf16.xpose.msra.mxu0 0
    %993 = vmatprep.subr.bf16.mxu0 0
    %994 = vmatpush1.bf16.xpose.msra.mxu0 0
    %995 = vmatprep.subr.bf16.mxu0 0
    %996 = vmatpush1.bf16.xpose.msra.mxu0 0
    %997 = vmatprep.subr.bf16.mxu0 0
    %998 = vmatpush1.bf16.xpose.msra.mxu0 0
    %999 = vmatprep.subr.bf16.mxu0 0
    %1000 = vmatpush1.bf16.xpose.msra.mxu0 0
    %1001 = vmatprep.subr.bf16.mxu0 0
    %1002 = vmatpush1.bf16.xpose.msra.mxu0 0
    %1003 = vmatprep.subr.bf16.mxu0 0
    %1004 = vmatpush1.bf16.xpose.msra.mxu0 0
    %1005 = vmatprep.subr.bf16.mxu0 0
    %1006 = vmatpush1.bf16.xpose.msra.mxu0 0
    %1007 = vmatprep.subr.bf16.mxu0 0
    %1008 = vmatpush1.bf16.xpose.msra.mxu0 0
    %1009 = vmatprep.subr.bf16.mxu0 0
    %1010 = vmatpush1.bf16.xpose.msra.mxu0 0
    %1011 = vmatprep.subr.bf16.mxu0 0
    %1012 = vmatpush1.bf16.xpose.msra.mxu0 0
    %1013 = vmatprep.subr.bf16.mxu0 0
    %1014 = vmatpush1.bf16.xpose.msra.mxu0 0
    %1015 = vmatprep.mubr.bf16.mxu0 0
    %1016 = vmatmul.mubr.bf16.gmra.mrb[0].mxu0 %v978
    %v1017 = vpop.f32.mrb[0].mxu0
    %v1018 = vadd.f32 0.0, %v1017
    %v1019 = vpop.f32.mrb[0].mxu0
    %v1020 = vpop.f32.mrb[0].mxu0
    %v1021 = vadd.f32 0.0, %v1020
    %v1022 = vpop.f32.mrb[0].mxu0
    %1023 = vdwg.mxu0
    %1024 = vrot.lane.b32.xlu0 %v179, 104
    %v1025 = vpop.permute.xlu0 %1024
    %1026 = vrot.lane.b32.xlu0 %v179, 40
    %v1027 = vpop.permute.xlu0 %1026
    %v1029 = vsel %vm188, %v1025, 0
    %v1032 = vsel %vm188, %v1027, 0
    %1034 = vmatprep.subr.bf16.mxu0 0
    %1035 = vmatpush1.bf16.xpose.msra.mxu0 %v1032
    %1036 = vmatprep.subr.bf16.mxu0 0
    %1037 = vmatpush1.bf16.xpose.msra.mxu0 0
    %1038 = vmatprep.subr.bf16.mxu0 0
    %1039 = vmatpush1.bf16.xpose.msra.mxu0 0
    %1040 = vmatprep.subr.bf16.mxu0 0
    %1041 = vmatpush1.bf16.xpose.msra.mxu0 0
    %1042 = vmatprep.subr.bf16.mxu0 0
    %1043 = vmatpush1.bf16.xpose.msra.mxu0 0
    %1044 = vmatprep.subr.bf16.mxu0 0
    %1045 = vmatpush1.bf16.xpose.msra.mxu0 0
    %1046 = vmatprep.subr.bf16.mxu0 0
    %1047 = vmatpush1.bf16.xpose.msra.mxu0 0
    %1048 = vmatprep.subr.bf16.mxu0 0
    %1049 = vmatpush1.bf16.xpose.msra.mxu0 0
    %1050 = vmatprep.subr.bf16.mxu0 0
    %1051 = vmatpush1.bf16.xpose.msra.mxu0 0
    %1052 = vmatprep.subr.bf16.mxu0 0
    %1053 = vmatpush1.bf16.xpose.msra.mxu0 0
    %1054 = vmatprep.subr.bf16.mxu0 0
    %1055 = vmatpush1.bf16.xpose.msra.mxu0 0
    %1056 = vmatprep.subr.bf16.mxu0 0
    %1057 = vmatpush1.bf16.xpose.msra.mxu0 0
    %1058 = vmatprep.subr.bf16.mxu0 0
    %1059 = vmatpush1.bf16.xpose.msra.mxu0 0
    %1060 = vmatprep.subr.bf16.mxu0 0
    %1061 = vmatpush1.bf16.xpose.msra.mxu0 0
    %1062 = vmatprep.subr.bf16.mxu0 0
    %1063 = vmatpush1.bf16.xpose.msra.mxu0 0
    %1064 = vmatprep.subr.bf16.mxu0 0
    %1065 = vmatpush1.bf16.xpose.msra.mxu0 0
    %1066 = vmatprep.mubr.bf16.mxu0 0
    %1067 = vmatmul.mubr.bf16.gmra.mrb[0].mxu0 %v1029
    %v1068 = vpop.f32.mrb[0].mxu0
    %v1069 = vadd.f32 0.0, %v1068
    %v1070 = vpop.f32.mrb[0].mxu0
    %v1071 = vpop.f32.mrb[0].mxu0
    %v1072 = vadd.f32 0.0, %v1071
    %v1073 = vpop.f32.mrb[0].mxu0
    %1074 = vdwg.mxu0
    %v1075 = vmul.f32 %v1018, 0.35355338
    %v1076 = vmul.f32 %v1021, 0.35355338
    %v1077 = vmul.f32 %v1069, 0.35355338
    %v1078 = vmul.f32 %v1072, 0.35355338
    %v1079 = vadd.f32 %v1075, %v295
    %v1080 = vadd.f32 %v1076, %v295
    %v1081 = vadd.f32 %v1077, %v299
    %v1082 = vadd.f32 %v1078, %v299
    %v1083 = vsel %vm306, %v1079, -inf
    %1084 = vmax.xlane.f32.xlu0 %v1083
    %v1085 = vpop.xlane.xlu0 %1084
    %v1086 = vsel %vm306, %v1080, -inf
    %1087 = vmax.xlane.f32.xlu0 %v1086
    %v1088 = vpop.xlane.xlu0 %1087
    %v1089 = vsel %vm306, %v1081, -inf
    %1090 = vmax.xlane.f32.xlu0 %v1089
    %v1091 = vpop.xlane.xlu0 %1090
    %v1092 = vsel %vm306, %v1082, -inf
    %1093 = vmax.xlane.f32.xlu0 %v1092
    %v1094 = vpop.xlane.xlu0 %1093
    %v1095 = vsub.f32 %v1079, %v1085
    %v1096 = vsub.f32 %v1080, %v1088
    %v1097 = vsub.f32 %v1081, %v1091
    %v1098 = vsub.f32 %v1082, %v1094
    %v1099 = vmul.f32 %v1095, 1.442695
    %v1100 = vpow.pop %v1099
    %v1101 = vmul.f32 %v1096, 1.442695
    %v1102 = vpow.pop %v1101
    %v1103 = vmul.f32 %v1097, 1.442695
    %v1104 = vpow.pop %v1103
    %v1105 = vmul.f32 %v1098, 1.442695
    %v1106 = vpow.pop %v1105
    %v1107 = vsel %vm306, %v1100, 0.0
    %1108 = vadd.xlane.f32.xlu0 %v1107
    %v1109 = vpop.xlane.xlu0 %1108
    %v1110 = vsel %vm306, %v1102, 0.0
    %1111 = vadd.xlane.f32.xlu0 %v1110
    %v1112 = vpop.xlane.xlu0 %1111
    %v1113 = vsel %vm306, %v1104, 0.0
    %1114 = vadd.xlane.f32.xlu0 %v1113
    %v1115 = vpop.xlane.xlu0 %1114
    %v1116 = vsel %vm306, %v1106, 0.0
    %1117 = vadd.xlane.f32.xlu0 %v1116
    %v1118 = vpop.xlane.xlu0 %1117
    %v1119 = vrcp.pop %v1109
    %v1120 = vrcp.pop %v1112
    %v1121 = vrcp.pop %v1115
    %v1122 = vrcp.pop %v1118
    %v1123 = vmul.f32 %v1100, %v1119
    %v1124 = vmul.f32 %v1102, %v1120
    %v1125 = vmul.f32 %v1104, %v1121
    %v1126 = vmul.f32 %v1106, %v1122
    %v1127 = vpack.c.bf16 %v1124, %v1123
    %v1128 = vpack.c.bf16 %v1126, %v1125
    %1129 = vrot.lane.b32.xlu0 %v178, 104
    %v1130 = vpop.permute.xlu0 %1129
    %v1133 = vsel %vm306, %v1127, 0
    %1135 = vmatprep.subr.bf16.mxu0 0
    %1136 = vmatpush1.bf16.msra.mxu0 %v1130
    %1137 = vmatprep.subr.bf16.mxu0 0
    %1138 = vmatpush1.bf16.msra.mxu0 0
    %1139 = vmatprep.subr.bf16.mxu0 0
    %1140 = vmatpush1.bf16.msra.mxu0 0
    %1141 = vmatprep.subr.bf16.mxu0 0
    %1142 = vmatpush1.bf16.msra.mxu0 0
    %1143 = vmatprep.subr.bf16.mxu0 0
    %1144 = vmatpush1.bf16.msra.mxu0 0
    %1145 = vmatprep.subr.bf16.mxu0 0
    %1146 = vmatpush1.bf16.msra.mxu0 0
    %1147 = vmatprep.subr.bf16.mxu0 0
    %1148 = vmatpush1.bf16.msra.mxu0 0
    %1149 = vmatprep.subr.bf16.mxu0 0
    %1150 = vmatpush1.bf16.msra.mxu0 0
    %1151 = vmatprep.subr.bf16.mxu0 0
    %1152 = vmatpush1.bf16.msra.mxu0 0
    %1153 = vmatprep.subr.bf16.mxu0 0
    %1154 = vmatpush1.bf16.msra.mxu0 0
    %1155 = vmatprep.subr.bf16.mxu0 0
    %1156 = vmatpush1.bf16.msra.mxu0 0
    %1157 = vmatprep.subr.bf16.mxu0 0
    %1158 = vmatpush1.bf16.msra.mxu0 0
    %1159 = vmatprep.subr.bf16.mxu0 0
    %1160 = vmatpush1.bf16.msra.mxu0 0
    %1161 = vmatprep.subr.bf16.mxu0 0
    %1162 = vmatpush1.bf16.msra.mxu0 0
    %1163 = vmatprep.subr.bf16.mxu0 0
    %1164 = vmatpush1.bf16.msra.mxu0 0
    %1165 = vmatprep.subr.bf16.mxu0 0
    %1166 = vmatpush1.bf16.msra.mxu0 0
    %1167 = vmatprep.mubr.bf16.mxu0 0
    %1168 = vmatmul.mubr.bf16.gmra.mrb[0].mxu0 %v1133
    %v1169 = vpop.f32.mrb[0].mxu0
    %v1170 = vadd.f32 0.0, %v1169
    %v1171 = vpop.f32.mrb[0].mxu0
    %v1172 = vpop.f32.mrb[0].mxu0
    %v1173 = vadd.f32 0.0, %v1172
    %v1174 = vpop.f32.mrb[0].mxu0
    %1175 = vdwg.mxu0
    %1176 = vrot.lane.b32.xlu0 %v180, 104
    %v1177 = vpop.permute.xlu0 %1176
    %v1180 = vsel %vm306, %v1128, 0
    %1182 = vmatprep.subr.bf16.mxu0 0
    %1183 = vmatpush1.bf16.msra.mxu0 %v1177
    %1184 = vmatprep.subr.bf16.mxu0 0
    %1185 = vmatpush1.bf16.msra.mxu0 0
    %1186 = vmatprep.subr.bf16.mxu0 0
    %1187 = vmatpush1.bf16.msra.mxu0 0
    %1188 = vmatprep.subr.bf16.mxu0 0
    %1189 = vmatpush1.bf16.msra.mxu0 0
    %1190 = vmatprep.subr.bf16.mxu0 0
    %1191 = vmatpush1.bf16.msra.mxu0 0
    %1192 = vmatprep.subr.bf16.mxu0 0
    %1193 = vmatpush1.bf16.msra.mxu0 0
    %1194 = vmatprep.subr.bf16.mxu0 0
    %1195 = vmatpush1.bf16.msra.mxu0 0
    %1196 = vmatprep.subr.bf16.mxu0 0
    %1197 = vmatpush1.bf16.msra.mxu0 0
    %1198 = vmatprep.subr.bf16.mxu0 0
    %1199 = vmatpush1.bf16.msra.mxu0 0
    %1200 = vmatprep.subr.bf16.mxu0 0
    %1201 = vmatpush1.bf16.msra.mxu0 0
    %1202 = vmatprep.subr.bf16.mxu0 0
    %1203 = vmatpush1.bf16.msra.mxu0 0
    %1204 = vmatprep.subr.bf16.mxu0 0
    %1205 = vmatpush1.bf16.msra.mxu0 0
    %1206 = vmatprep.subr.bf16.mxu0 0
    %1207 = vmatpush1.bf16.msra.mxu0 0
    %1208 = vmatprep.subr.bf16.mxu0 0
    %1209 = vmatpush1.bf16.msra.mxu0 0
    %1210 = vmatprep.subr.bf16.mxu0 0
    %1211 = vmatpush1.bf16.msra.mxu0 0
    %1212 = vmatprep.subr.bf16.mxu0 0
    %1213 = vmatpush1.bf16.msra.mxu0 0
    %1214 = vmatprep.mubr.bf16.mxu0 0
    %1215 = vmatmul.mubr.bf16.gmra.mrb[0].mxu0 %v1180
    %v1216 = vpop.f32.mrb[0].mxu0
    %v1217 = vadd.f32 0.0, %v1216
    %v1218 = vpop.f32.mrb[0].mxu0
    %v1219 = vpop.f32.mrb[0].mxu0
    %v1220 = vadd.f32 0.0, %v1219
    %v1221 = vpop.f32.mrb[0].mxu0
    %1222 = vdwg.mxu0
    %v1223 = vpack.c.bf16 %v1173, %v1170
    %v1224 = vpack.c.bf16 %v1220, %v1217
    %1227 = vrot.lane.b32.xlu0 %v1223, 24
    %v1228 = vpop.permute.xlu0 %1227
    %1229 = vrot.lane.b32.xlu0 %v1224, 24
    %v1230 = vpop.permute.xlu0 %1229
    %vm1233 = vcmask 261312
    %1234 = vst.msk [vmem:[#allocation2] sm:$0xff] %vm1233, %v1228
    %1235 = vst.msk [vmem:[#allocation2 + $0x8] sm:$0xff] %vm1233, %v1230
    %1236 = vrot.lane.b32.xlu0 %v177, 96
    %v1237 = vpop.permute.xlu0 %1236
    %1238 = vrot.lane.b32.xlu0 %v177, 32
    %v1239 = vpop.permute.xlu0 %1238
    %v1241 = vsel %vm188, %v1237, 0
    %v1244 = vsel %vm188, %v1239, 0
    %1246 = vmatprep.subr.bf16.mxu0 0
    %1247 = vmatpush1.bf16.xpose.msra.mxu0 %v1244
    %1248 = vmatprep.subr.bf16.mxu0 0
    %1249 = vmatpush1.bf16.xpose.msra.mxu0 0
    %1250 = vmatprep.subr.bf16.mxu0 0
    %1251 = vmatpush1.bf16.xpose.msra.mxu0 0
    %1252 = vmatprep.subr.bf16.mxu0 0
    %1253 = vmatpush1.bf16.xpose.msra.mxu0 0
    %1254 = vmatprep.subr.bf16.mxu0 0
    %1255 = vmatpush1.bf16.xpose.msra.mxu0 0
    %1256 = vmatprep.subr.bf16.mxu0 0
    %1257 = vmatpush1.bf16.xpose.msra.mxu0 0
    %1258 = vmatprep.subr.bf16.mxu0 0
    %1259 = vmatpush1.bf16.xpose.msra.mxu0 0
    %1260 = vmatprep.subr.bf16.mxu0 0
    %1261 = vmatpush1.bf16.xpose.msra.mxu0 0
    %1262 = vmatprep.subr.bf16.mxu0 0
    %1263 = vmatpush1.bf16.xpose.msra.mxu0 0
    %1264 = vmatprep.subr.bf16.mxu0 0
    %1265 = vmatpush1.bf16.xpose.msra.mxu0 0
    %1266 = vmatprep.subr.bf16.mxu0 0
    %1267 = vmatpush1.bf16.xpose.msra.mxu0 0
    %1268 = vmatprep.subr.bf16.mxu0 0
    %1269 = vmatpush1.bf16.xpose.msra.mxu0 0
    %1270 = vmatprep.subr.bf16.mxu0 0
    %1271 = vmatpush1.bf16.xpose.msra.mxu0 0
    %1272 = vmatprep.subr.bf16.mxu0 0
    %1273 = vmatpush1.bf16.xpose.msra.mxu0 0
    %1274 = vmatprep.subr.bf16.mxu0 0
    %1275 = vmatpush1.bf16.xpose.msra.mxu0 0
    %1276 = vmatprep.subr.bf16.mxu0 0
    %1277 = vmatpush1.bf16.xpose.msra.mxu0 0
    %1278 = vmatprep.mubr.bf16.mxu0 0
    %1279 = vmatmul.mubr.bf16.gmra.mrb[0].mxu0 %v1241
    %v1280 = vpop.f32.mrb[0].mxu0
    %v1281 = vadd.f32 0.0, %v1280
    %v1282 = vpop.f32.mrb[0].mxu0
    %v1283 = vpop.f32.mrb[0].mxu0
    %v1284 = vadd.f32 0.0, %v1283
    %v1285 = vpop.f32.mrb[0].mxu0
    %1286 = vdwg.mxu0
    %1287 = vrot.lane.b32.xlu0 %v179, 96
    %v1288 = vpop.permute.xlu0 %1287
    %1289 = vrot.lane.b32.xlu0 %v179, 32
    %v1290 = vpop.permute.xlu0 %1289
    %v1292 = vsel %vm188, %v1288, 0
    %v1295 = vsel %vm188, %v1290, 0
    %1297 = vmatprep.subr.bf16.mxu0 0
    %1298 = vmatpush1.bf16.xpose.msra.mxu0 %v1295
    %1299 = vmatprep.subr.bf16.mxu0 0
    %1300 = vmatpush1.bf16.xpose.msra.mxu0 0
    %1301 = vmatprep.subr.bf16.mxu0 0
    %1302 = vmatpush1.bf16.xpose.msra.mxu0 0
    %1303 = vmatprep.subr.bf16.mxu0 0
    %1304 = vmatpush1.bf16.xpose.msra.mxu0 0
    %1305 = vmatprep.subr.bf16.mxu0 0
    %1306 = vmatpush1.bf16.xpose.msra.mxu0 0
    %1307 = vmatprep.subr.bf16.mxu0 0
    %1308 = vmatpush1.bf16.xpose.msra.mxu0 0
    %1309 = vmatprep.subr.bf16.mxu0 0
    %1310 = vmatpush1.bf16.xpose.msra.mxu0 0
    %1311 = vmatprep.subr.bf16.mxu0 0
    %1312 = vmatpush1.bf16.xpose.msra.mxu0 0
    %1313 = vmatprep.subr.bf16.mxu0 0
    %1314 = vmatpush1.bf16.xpose.msra.mxu0 0
    %1315 = vmatprep.subr.bf16.mxu0 0
    %1316 = vmatpush1.bf16.xpose.msra.mxu0 0
    %1317 = vmatprep.subr.bf16.mxu0 0
    %1318 = vmatpush1.bf16.xpose.msra.mxu0 0
    %1319 = vmatprep.subr.bf16.mxu0 0
    %1320 = vmatpush1.bf16.xpose.msra.mxu0 0
    %1321 = vmatprep.subr.bf16.mxu0 0
    %1322 = vmatpush1.bf16.xpose.msra.mxu0 0
    %1323 = vmatprep.subr.bf16.mxu0 0
    %1324 = vmatpush1.bf16.xpose.msra.mxu0 0
    %1325 = vmatprep.subr.bf16.mxu0 0
    %1326 = vmatpush1.bf16.xpose.msra.mxu0 0
    %1327 = vmatprep.subr.bf16.mxu0 0
    %1328 = vmatpush1.bf16.xpose.msra.mxu0 0
    %1329 = vmatprep.mubr.bf16.mxu0 0
    %1330 = vmatmul.mubr.bf16.gmra.mrb[0].mxu0 %v1292
    %v1331 = vpop.f32.mrb[0].mxu0
    %v1332 = vadd.f32 0.0, %v1331
    %v1333 = vpop.f32.mrb[0].mxu0
    %v1334 = vpop.f32.mrb[0].mxu0
    %v1335 = vadd.f32 0.0, %v1334
    %v1336 = vpop.f32.mrb[0].mxu0
    %1337 = vdwg.mxu0
    %v1338 = vmul.f32 %v1281, 0.35355338
    %v1339 = vmul.f32 %v1284, 0.35355338
    %v1340 = vmul.f32 %v1332, 0.35355338
    %v1341 = vmul.f32 %v1335, 0.35355338
    %v1342 = vadd.f32 %v1338, %v295
    %v1343 = vadd.f32 %v1339, %v295
    %v1344 = vadd.f32 %v1340, %v299
    %v1345 = vadd.f32 %v1341, %v299
    %v1346 = vsel %vm306, %v1342, -inf
    %1347 = vmax.xlane.f32.xlu0 %v1346
    %v1348 = vpop.xlane.xlu0 %1347
    %v1349 = vsel %vm306, %v1343, -inf
    %1350 = vmax.xlane.f32.xlu0 %v1349
    %v1351 = vpop.xlane.xlu0 %1350
    %v1352 = vsel %vm306, %v1344, -inf
    %1353 = vmax.xlane.f32.xlu0 %v1352
    %v1354 = vpop.xlane.xlu0 %1353
    %v1355 = vsel %vm306, %v1345, -inf
    %1356 = vmax.xlane.f32.xlu0 %v1355
    %v1357 = vpop.xlane.xlu0 %1356
    %v1358 = vsub.f32 %v1342, %v1348
    %v1359 = vsub.f32 %v1343, %v1351
    %v1360 = vsub.f32 %v1344, %v1354
    %v1361 = vsub.f32 %v1345, %v1357
    %v1362 = vmul.f32 %v1358, 1.442695
    %v1363 = vpow.pop %v1362
    %v1364 = vmul.f32 %v1359, 1.442695
    %v1365 = vpow.pop %v1364
    %v1366 = vmul.f32 %v1360, 1.442695
    %v1367 = vpow.pop %v1366
    %v1368 = vmul.f32 %v1361, 1.442695
    %v1369 = vpow.pop %v1368
    %v1370 = vsel %vm306, %v1363, 0.0
    %1371 = vadd.xlane.f32.xlu0 %v1370
    %v1372 = vpop.xlane.xlu0 %1371
    %v1373 = vsel %vm306, %v1365, 0.0
    %1374 = vadd.xlane.f32.xlu0 %v1373
    %v1375 = vpop.xlane.xlu0 %1374
    %v1376 = vsel %vm306, %v1367, 0.0
    %1377 = vadd.xlane.f32.xlu0 %v1376
    %v1378 = vpop.xlane.xlu0 %1377
    %v1379 = vsel %vm306, %v1369, 0.0
    %1380 = vadd.xlane.f32.xlu0 %v1379
    %v1381 = vpop.xlane.xlu0 %1380
    %v1382 = vrcp.pop %v1372
    %v1383 = vrcp.pop %v1375
    %v1384 = vrcp.pop %v1378
    %v1385 = vrcp.pop %v1381
    %v1386 = vmul.f32 %v1363, %v1382
    %v1387 = vmul.f32 %v1365, %v1383
    %v1388 = vmul.f32 %v1367, %v1384
    %v1389 = vmul.f32 %v1369, %v1385
    %v1390 = vpack.c.bf16 %v1387, %v1386
    %v1391 = vpack.c.bf16 %v1389, %v1388
    %1392 = vrot.lane.b32.xlu0 %v178, 96
    %v1393 = vpop.permute.xlu0 %1392
    %v1396 = vsel %vm306, %v1390, 0
    %1398 = vmatprep.subr.bf16.mxu0 0
    %1399 = vmatpush1.bf16.msra.mxu0 %v1393
    %1400 = vmatprep.subr.bf16.mxu0 0
    %1401 = vmatpush1.bf16.msra.mxu0 0
    %1402 = vmatprep.subr.bf16.mxu0 0
    %1403 = vmatpush1.bf16.msra.mxu0 0
    %1404 = vmatprep.subr.bf16.mxu0 0
    %1405 = vmatpush1.bf16.msra.mxu0 0
    %1406 = vmatprep.subr.bf16.mxu0 0
    %1407 = vmatpush1.bf16.msra.mxu0 0
    %1408 = vmatprep.subr.bf16.mxu0 0
    %1409 = vmatpush1.bf16.msra.mxu0 0
    %1410 = vmatprep.subr.bf16.mxu0 0
    %1411 = vmatpush1.bf16.msra.mxu0 0
    %1412 = vmatprep.subr.bf16.mxu0 0
    %1413 = vmatpush1.bf16.msra.mxu0 0
    %1414 = vmatprep.subr.bf16.mxu0 0
    %1415 = vmatpush1.bf16.msra.mxu0 0
    %1416 = vmatprep.subr.bf16.mxu0 0
    %1417 = vmatpush1.bf16.msra.mxu0 0
    %1418 = vmatprep.subr.bf16.mxu0 0
    %1419 = vmatpush1.bf16.msra.mxu0 0
    %1420 = vmatprep.subr.bf16.mxu0 0
    %1421 = vmatpush1.bf16.msra.mxu0 0
    %1422 = vmatprep.subr.bf16.mxu0 0
    %1423 = vmatpush1.bf16.msra.mxu0 0
    %1424 = vmatprep.subr.bf16.mxu0 0
    %1425 = vmatpush1.bf16.msra.mxu0 0
    %1426 = vmatprep.subr.bf16.mxu0 0
    %1427 = vmatpush1.bf16.msra.mxu0 0
    %1428 = vmatprep.subr.bf16.mxu0 0
    %1429 = vmatpush1.bf16.msra.mxu0 0
    %1430 = vmatprep.mubr.bf16.mxu0 0
    %1431 = vmatmul.mubr.bf16.gmra.mrb[0].mxu0 %v1396
    %v1432 = vpop.f32.mrb[0].mxu0
    %v1433 = vadd.f32 0.0, %v1432
    %v1434 = vpop.f32.mrb[0].mxu0
    %v1435 = vpop.f32.mrb[0].mxu0
    %v1436 = vadd.f32 0.0, %v1435
    %v1437 = vpop.f32.mrb[0].mxu0
    %1438 = vdwg.mxu0
    %1439 = vrot.lane.b32.xlu0 %v180, 96
    %v1440 = vpop.permute.xlu0 %1439
    %v1443 = vsel %vm306, %v1391, 0
    %1445 = vmatprep.subr.bf16.mxu0 0
    %1446 = vmatpush1.bf16.msra.mxu0 %v1440
    %1447 = vmatprep.subr.bf16.mxu0 0
    %1448 = vmatpush1.bf16.msra.mxu0 0
    %1449 = vmatprep.subr.bf16.mxu0 0
    %1450 = vmatpush1.bf16.msra.mxu0 0
    %1451 = vmatprep.subr.bf16.mxu0 0
    %1452 = vmatpush1.bf16.msra.mxu0 0
    %1453 = vmatprep.subr.bf16.mxu0 0
    %1454 = vmatpush1.bf16.msra.mxu0 0
    %1455 = vmatprep.subr.bf16.mxu0 0
    %1456 = vmatpush1.bf16.msra.mxu0 0
    %1457 = vmatprep.subr.bf16.mxu0 0
    %1458 = vmatpush1.bf16.msra.mxu0 0
    %1459 = vmatprep.subr.bf16.mxu0 0
    %1460 = vmatpush1.bf16.msra.mxu0 0
    %1461 = vmatprep.subr.bf16.mxu0 0
    %1462 = vmatpush1.bf16.msra.mxu0 0
    %1463 = vmatprep.subr.bf16.mxu0 0
    %1464 = vmatpush1.bf16.msra.mxu0 0
    %1465 = vmatprep.subr.bf16.mxu0 0
    %1466 = vmatpush1.bf16.msra.mxu0 0
    %1467 = vmatprep.subr.bf16.mxu0 0
    %1468 = vmatpush1.bf16.msra.mxu0 0
    %1469 = vmatprep.subr.bf16.mxu0 0
    %1470 = vmatpush1.bf16.msra.mxu0 0
    %1471 = vmatprep.subr.bf16.mxu0 0
    %1472 = vmatpush1.bf16.msra.mxu0 0
    %1473 = vmatprep.subr.bf16.mxu0 0
    %1474 = vmatpush1.bf16.msra.mxu0 0
    %1475 = vmatprep.subr.bf16.mxu0 0
    %1476 = vmatpush1.bf16.msra.mxu0 0
    %1477 = vmatprep.mubr.bf16.mxu0 0
    %1478 = vmatmul.mubr.bf16.gmra.mrb[0].mxu0 %v1443
    %v1479 = vpop.f32.mrb[0].mxu0
    %v1480 = vadd.f32 0.0, %v1479
    %v1481 = vpop.f32.mrb[0].mxu0
    %v1482 = vpop.f32.mrb[0].mxu0
    %v1483 = vadd.f32 0.0, %v1482
    %v1484 = vpop.f32.mrb[0].mxu0
    %1485 = vdwg.mxu0
    %v1486 = vpack.c.bf16 %v1436, %v1433
    %v1487 = vpack.c.bf16 %v1483, %v1480
    %1490 = vrot.lane.b32.xlu0 %v1486, 32
    %v1491 = vpop.permute.xlu0 %1490
    %1492 = vrot.lane.b32.xlu0 %v1487, 32
    %v1493 = vpop.permute.xlu0 %1492
    %vm1496 = vcmask 326912
    %1497 = vst.msk [vmem:[#allocation2] sm:$0xff] %vm1496, %v1491
    %1498 = vst.msk [vmem:[#allocation2 + $0x8] sm:$0xff] %vm1496, %v1493
    %1499 = vrot.lane.b32.xlu0 %v177, 88
    %v1500 = vpop.permute.xlu0 %1499
    %1501 = vrot.lane.b32.xlu0 %v177, 24
    %v1502 = vpop.permute.xlu0 %1501
    %v1504 = vsel %vm188, %v1500, 0
    %v1507 = vsel %vm188, %v1502, 0
    %1509 = vmatprep.subr.bf16.mxu0 0
    %1510 = vmatpush1.bf16.xpose.msra.mxu0 %v1507
    %1511 = vmatprep.subr.bf16.mxu0 0
    %1512 = vmatpush1.bf16.xpose.msra.mxu0 0
    %1513 = vmatprep.subr.bf16.mxu0 0
    %1514 = vmatpush1.bf16.xpose.msra.mxu0 0
    %1515 = vmatprep.subr.bf16.mxu0 0
    %1516 = vmatpush1.bf16.xpose.msra.mxu0 0
    %1517 = vmatprep.subr.bf16.mxu0 0
    %1518 = vmatpush1.bf16.xpose.msra.mxu0 0
    %1519 = vmatprep.subr.bf16.mxu0 0
    %1520 = vmatpush1.bf16.xpose.msra.mxu0 0
    %1521 = vmatprep.subr.bf16.mxu0 0
    %1522 = vmatpush1.bf16.xpose.msra.mxu0 0
    %1523 = vmatprep.subr.bf16.mxu0 0
    %1524 = vmatpush1.bf16.xpose.msra.mxu0 0
    %1525 = vmatprep.subr.bf16.mxu0 0
    %1526 = vmatpush1.bf16.xpose.msra.mxu0 0
    %1527 = vmatprep.subr.bf16.mxu0 0
    %1528 = vmatpush1.bf16.xpose.msra.mxu0 0
    %1529 = vmatprep.subr.bf16.mxu0 0
    %1530 = vmatpush1.bf16.xpose.msra.mxu0 0
    %1531 = vmatprep.subr.bf16.mxu0 0
    %1532 = vmatpush1.bf16.xpose.msra.mxu0 0
    %1533 = vmatprep.subr.bf16.mxu0 0
    %1534 = vmatpush1.bf16.xpose.msra.mxu0 0
    %1535 = vmatprep.subr.bf16.mxu0 0
    %1536 = vmatpush1.bf16.xpose.msra.mxu0 0
    %1537 = vmatprep.subr.bf16.mxu0 0
    %1538 = vmatpush1.bf16.xpose.msra.mxu0 0
    %1539 = vmatprep.subr.bf16.mxu0 0
    %1540 = vmatpush1.bf16.xpose.msra.mxu0 0
    %1541 = vmatprep.mubr.bf16.mxu0 0
    %1542 = vmatmul.mubr.bf16.gmra.mrb[0].mxu0 %v1504
    %v1543 = vpop.f32.mrb[0].mxu0
    %v1544 = vadd.f32 0.0, %v1543
    %v1545 = vpop.f32.mrb[0].mxu0
    %v1546 = vpop.f32.mrb[0].mxu0
    %v1547 = vadd.f32 0.0, %v1546
    %v1548 = vpop.f32.mrb[0].mxu0
    %1549 = vdwg.mxu0
    %1550 = vrot.lane.b32.xlu0 %v179, 88
    %v1551 = vpop.permute.xlu0 %1550
    %1552 = vrot.lane.b32.xlu0 %v179, 24
    %v1553 = vpop.permute.xlu0 %1552
    %v1555 = vsel %vm188, %v1551, 0
    %v1558 = vsel %vm188, %v1553, 0
    %1560 = vmatprep.subr.bf16.mxu0 0
    %1561 = vmatpush1.bf16.xpose.msra.mxu0 %v1558
    %1562 = vmatprep.subr.bf16.mxu0 0
    %1563 = vmatpush1.bf16.xpose.msra.mxu0 0
    %1564 = vmatprep.subr.bf16.mxu0 0
    %1565 = vmatpush1.bf16.xpose.msra.mxu0 0
    %1566 = vmatprep.subr.bf16.mxu0 0
    %1567 = vmatpush1.bf16.xpose.msra.mxu0 0
    %1568 = vmatprep.subr.bf16.mxu0 0
    %1569 = vmatpush1.bf16.xpose.msra.mxu0 0
    %1570 = vmatprep.subr.bf16.mxu0 0
    %1571 = vmatpush1.bf16.xpose.msra.mxu0 0
    %1572 = vmatprep.subr.bf16.mxu0 0
    %1573 = vmatpush1.bf16.xpose.msra.mxu0 0
    %1574 = vmatprep.subr.bf16.mxu0 0
    %1575 = vmatpush1.bf16.xpose.msra.mxu0 0
    %1576 = vmatprep.subr.bf16.mxu0 0
    %1577 = vmatpush1.bf16.xpose.msra.mxu0 0
    %1578 = vmatprep.subr.bf16.mxu0 0
    %1579 = vmatpush1.bf16.xpose.msra.mxu0 0
    %1580 = vmatprep.subr.bf16.mxu0 0
    %1581 = vmatpush1.bf16.xpose.msra.mxu0 0
    %1582 = vmatprep.subr.bf16.mxu0 0
    %1583 = vmatpush1.bf16.xpose.msra.mxu0 0
    %1584 = vmatprep.subr.bf16.mxu0 0
    %1585 = vmatpush1.bf16.xpose.msra.mxu0 0
    %1586 = vmatprep.subr.bf16.mxu0 0
    %1587 = vmatpush1.bf16.xpose.msra.mxu0 0
    %1588 = vmatprep.subr.bf16.mxu0 0
    %1589 = vmatpush1.bf16.xpose.msra.mxu0 0
    %1590 = vmatprep.subr.bf16.mxu0 0
    %1591 = vmatpush1.bf16.xpose.msra.mxu0 0
    %1592 = vmatprep.mubr.bf16.mxu0 0
    %1593 = vmatmul.mubr.bf16.gmra.mrb[0].mxu0 %v1555
    %v1594 = vpop.f32.mrb[0].mxu0
    %v1595 = vadd.f32 0.0, %v1594
    %v1596 = vpop.f32.mrb[0].mxu0
    %v1597 = vpop.f32.mrb[0].mxu0
    %v1598 = vadd.f32 0.0, %v1597
    %v1599 = vpop.f32.mrb[0].mxu0
    %1600 = vdwg.mxu0
    %v1601 = vmul.f32 %v1544, 0.35355338
    %v1602 = vmul.f32 %v1547, 0.35355338
    %v1603 = vmul.f32 %v1595, 0.35355338
    %v1604 = vmul.f32 %v1598, 0.35355338
    %v1605 = vadd.f32 %v1601, %v295
    %v1606 = vadd.f32 %v1602, %v295
    %v1607 = vadd.f32 %v1603, %v299
    %v1608 = vadd.f32 %v1604, %v299
    %v1609 = vsel %vm306, %v1605, -inf
    %1610 = vmax.xlane.f32.xlu0 %v1609
    %v1611 = vpop.xlane.xlu0 %1610
    %v1612 = vsel %vm306, %v1606, -inf
    %1613 = vmax.xlane.f32.xlu0 %v1612
    %v1614 = vpop.xlane.xlu0 %1613
    %v1615 = vsel %vm306, %v1607, -inf
    %1616 = vmax.xlane.f32.xlu0 %v1615
    %v1617 = vpop.xlane.xlu0 %1616
    %v1618 = vsel %vm306, %v1608, -inf
    %1619 = vmax.xlane.f32.xlu0 %v1618
    %v1620 = vpop.xlane.xlu0 %1619
    %v1621 = vsub.f32 %v1605, %v1611
    %v1622 = vsub.f32 %v1606, %v1614
    %v1623 = vsub.f32 %v1607, %v1617
    %v1624 = vsub.f32 %v1608, %v1620
    %v1625 = vmul.f32 %v1621, 1.442695
    %v1626 = vpow.pop %v1625
    %v1627 = vmul.f32 %v1622, 1.442695
    %v1628 = vpow.pop %v1627
    %v1629 = vmul.f32 %v1623, 1.442695
    %v1630 = vpow.pop %v1629
    %v1631 = vmul.f32 %v1624, 1.442695
    %v1632 = vpow.pop %v1631
    %v1633 = vsel %vm306, %v1626, 0.0
    %1634 = vadd.xlane.f32.xlu0 %v1633
    %v1635 = vpop.xlane.xlu0 %1634
    %v1636 = vsel %vm306, %v1628, 0.0
    %1637 = vadd.xlane.f32.xlu0 %v1636
    %v1638 = vpop.xlane.xlu0 %1637
    %v1639 = vsel %vm306, %v1630, 0.0
    %1640 = vadd.xlane.f32.xlu0 %v1639
    %v1641 = vpop.xlane.xlu0 %1640
    %v1642 = vsel %vm306, %v1632, 0.0
    %1643 = vadd.xlane.f32.xlu0 %v1642
    %v1644 = vpop.xlane.xlu0 %1643
    %v1645 = vrcp.pop %v1635
    %v1646 = vrcp.pop %v1638
    %v1647 = vrcp.pop %v1641
    %v1648 = vrcp.pop %v1644
    %v1649 = vmul.f32 %v1626, %v1645
    %v1650 = vmul.f32 %v1628, %v1646
    %v1651 = vmul.f32 %v1630, %v1647
    %v1652 = vmul.f32 %v1632, %v1648
    %v1653 = vpack.c.bf16 %v1650, %v1649
    %v1654 = vpack.c.bf16 %v1652, %v1651
    %1655 = vrot.lane.b32.xlu0 %v178, 88
    %v1656 = vpop.permute.xlu0 %1655
    %v1659 = vsel %vm306, %v1653, 0
    %1661 = vmatprep.subr.bf16.mxu0 0
    %1662 = vmatpush1.bf16.msra.mxu0 %v1656
    %1663 = vmatprep.subr.bf16.mxu0 0
    %1664 = vmatpush1.bf16.msra.mxu0 0
    %1665 = vmatprep.subr.bf16.mxu0 0
    %1666 = vmatpush1.bf16.msra.mxu0 0
    %1667 = vmatprep.subr.bf16.mxu0 0
    %1668 = vmatpush1.bf16.msra.mxu0 0
    %1669 = vmatprep.subr.bf16.mxu0 0
    %1670 = vmatpush1.bf16.msra.mxu0 0
    %1671 = vmatprep.subr.bf16.mxu0 0
    %1672 = vmatpush1.bf16.msra.mxu0 0
    %1673 = vmatprep.subr.bf16.mxu0 0
    %1674 = vmatpush1.bf16.msra.mxu0 0
    %1675 = vmatprep.subr.bf16.mxu0 0
    %1676 = vmatpush1.bf16.msra.mxu0 0
    %1677 = vmatprep.subr.bf16.mxu0 0
    %1678 = vmatpush1.bf16.msra.mxu0 0
    %1679 = vmatprep.subr.bf16.mxu0 0
    %1680 = vmatpush1.bf16.msra.mxu0 0
    %1681 = vmatprep.subr.bf16.mxu0 0
    %1682 = vmatpush1.bf16.msra.mxu0 0
    %1683 = vmatprep.subr.bf16.mxu0 0
    %1684 = vmatpush1.bf16.msra.mxu0 0
    %1685 = vmatprep.subr.bf16.mxu0 0
    %1686 = vmatpush1.bf16.msra.mxu0 0
    %1687 = vmatprep.subr.bf16.mxu0 0
    %1688 = vmatpush1.bf16.msra.mxu0 0
    %1689 = vmatprep.subr.bf16.mxu0 0
    %1690 = vmatpush1.bf16.msra.mxu0 0
    %1691 = vmatprep.subr.bf16.mxu0 0
    %1692 = vmatpush1.bf16.msra.mxu0 0
    %1693 = vmatprep.mubr.bf16.mxu0 0
    %1694 = vmatmul.mubr.bf16.gmra.mrb[0].mxu0 %v1659
    %v1695 = vpop.f32.mrb[0].mxu0
    %v1696 = vadd.f32 0.0, %v1695
    %v1697 = vpop.f32.mrb[0].mxu0
    %v1698 = vpop.f32.mrb[0].mxu0
    %v1699 = vadd.f32 0.0, %v1698
    %v1700 = vpop.f32.mrb[0].mxu0
    %1701 = vdwg.mxu0
    %1702 = vrot.lane.b32.xlu0 %v180, 88
    %v1703 = vpop.permute.xlu0 %1702
    %v1706 = vsel %vm306, %v1654, 0
    %1708 = vmatprep.subr.bf16.mxu0 0
    %1709 = vmatpush1.bf16.msra.mxu0 %v1703
    %1710 = vmatprep.subr.bf16.mxu0 0
    %1711 = vmatpush1.bf16.msra.mxu0 0
    %1712 = vmatprep.subr.bf16.mxu0 0
    %1713 = vmatpush1.bf16.msra.mxu0 0
    %1714 = vmatprep.subr.bf16.mxu0 0
    %1715 = vmatpush1.bf16.msra.mxu0 0
    %1716 = vmatprep.subr.bf16.mxu0 0
    %1717 = vmatpush1.bf16.msra.mxu0 0
    %1718 = vmatprep.subr.bf16.mxu0 0
    %1719 = vmatpush1.bf16.msra.mxu0 0
    %1720 = vmatprep.subr.bf16.mxu0 0
    %1721 = vmatpush1.bf16.msra.mxu0 0
    %1722 = vmatprep.subr.bf16.mxu0 0
    %1723 = vmatpush1.bf16.msra.mxu0 0
    %1724 = vmatprep.subr.bf16.mxu0 0
    %1725 = vmatpush1.bf16.msra.mxu0 0
    %1726 = vmatprep.subr.bf16.mxu0 0
    %1727 = vmatpush1.bf16.msra.mxu0 0
    %1728 = vmatprep.subr.bf16.mxu0 0
    %1729 = vmatpush1.bf16.msra.mxu0 0
    %1730 = vmatprep.subr.bf16.mxu0 0
    %1731 = vmatpush1.bf16.msra.mxu0 0
    %1732 = vmatprep.subr.bf16.mxu0 0
    %1733 = vmatpush1.bf16.msra.mxu0 0
    %1734 = vmatprep.subr.bf16.mxu0 0
    %1735 = vmatpush1.bf16.msra.mxu0 0
    %1736 = vmatprep.subr.bf16.mxu0 0
    %1737 = vmatpush1.bf16.msra.mxu0 0
    %1738 = vmatprep.subr.bf16.mxu0 0
    %1739 = vmatpush1.bf16.msra.mxu0 0
    %1740 = vmatprep.mubr.bf16.mxu0 0
    %1741 = vmatmul.mubr.bf16.gmra.mrb[0].mxu0 %v1706
    %v1742 = vpop.f32.mrb[0].mxu0
    %v1743 = vadd.f32 0.0, %v1742
    %v1744 = vpop.f32.mrb[0].mxu0
    %v1745 = vpop.f32.mrb[0].mxu0
    %v1746 = vadd.f32 0.0, %v1745
    %v1747 = vpop.f32.mrb[0].mxu0
    %1748 = vdwg.mxu0
    %v1749 = vpack.c.bf16 %v1699, %v1696
    %v1750 = vpack.c.bf16 %v1746, %v1743
    %1753 = vrot.lane.b32.xlu0 %v1749, 40
    %v1754 = vpop.permute.xlu0 %1753
    %1755 = vrot.lane.b32.xlu0 %v1750, 40
    %v1756 = vpop.permute.xlu0 %1755
    %vm1759 = vcmask 392512
    %1760 = vst.msk [vmem:[#allocation2] sm:$0xff] %vm1759, %v1754
    %1761 = vst.msk [vmem:[#allocation2 + $0x8] sm:$0xff] %vm1759, %v1756
    %1762 = vrot.lane.b32.xlu0 %v177, 80
    %v1763 = vpop.permute.xlu0 %1762
    %1764 = vrot.lane.b32.xlu0 %v177, 16
    %v1765 = vpop.permute.xlu0 %1764
    %v1767 = vsel %vm188, %v1763, 0
    %v1770 = vsel %vm188, %v1765, 0
    %1772 = vmatprep.subr.bf16.mxu0 0
    %1773 = vmatpush1.bf16.xpose.msra.mxu0 %v1770
    %1774 = vmatprep.subr.bf16.mxu0 0
    %1775 = vmatpush1.bf16.xpose.msra.mxu0 0
    %1776 = vmatprep.subr.bf16.mxu0 0
    %1777 = vmatpush1.bf16.xpose.msra.mxu0 0
    %1778 = vmatprep.subr.bf16.mxu0 0
    %1779 = vmatpush1.bf16.xpose.msra.mxu0 0
    %1780 = vmatprep.subr.bf16.mxu0 0
    %1781 = vmatpush1.bf16.xpose.msra.mxu0 0
    %1782 = vmatprep.subr.bf16.mxu0 0
    %1783 = vmatpush1.bf16.xpose.msra.mxu0 0
    %1784 = vmatprep.subr.bf16.mxu0 0
    %1785 = vmatpush1.bf16.xpose.msra.mxu0 0
    %1786 = vmatprep.subr.bf16.mxu0 0
    %1787 = vmatpush1.bf16.xpose.msra.mxu0 0
    %1788 = vmatprep.subr.bf16.mxu0 0
    %1789 = vmatpush1.bf16.xpose.msra.mxu0 0
    %1790 = vmatprep.subr.bf16.mxu0 0
    %1791 = vmatpush1.bf16.xpose.msra.mxu0 0
    %1792 = vmatprep.subr.bf16.mxu0 0
    %1793 = vmatpush1.bf16.xpose.msra.mxu0 0
    %1794 = vmatprep.subr.bf16.mxu0 0
    %1795 = vmatpush1.bf16.xpose.msra.mxu0 0
    %1796 = vmatprep.subr.bf16.mxu0 0
    %1797 = vmatpush1.bf16.xpose.msra.mxu0 0
    %1798 = vmatprep.subr.bf16.mxu0 0
    %1799 = vmatpush1.bf16.xpose.msra.mxu0 0
    %1800 = vmatprep.subr.bf16.mxu0 0
    %1801 = vmatpush1.bf16.xpose.msra.mxu0 0
    %1802 = vmatprep.subr.bf16.mxu0 0
    %1803 = vmatpush1.bf16.xpose.msra.mxu0 0
    %1804 = vmatprep.mubr.bf16.mxu0 0
    %1805 = vmatmul.mubr.bf16.gmra.mrb[0].mxu0 %v1767
    %v1806 = vpop.f32.mrb[0].mxu0
    %v1807 = vadd.f32 0.0, %v1806
    %v1808 = vpop.f32.mrb[0].mxu0
    %v1809 = vpop.f32.mrb[0].mxu0
    %v1810 = vadd.f32 0.0, %v1809
    %v1811 = vpop.f32.mrb[0].mxu0
    %1812 = vdwg.mxu0
    %1813 = vrot.lane.b32.xlu0 %v179, 80
    %v1814 = vpop.permute.xlu0 %1813
    %1815 = vrot.lane.b32.xlu0 %v179, 16
    %v1816 = vpop.permute.xlu0 %1815
    %v1818 = vsel %vm188, %v1814, 0
    %v1821 = vsel %vm188, %v1816, 0
    %1823 = vmatprep.subr.bf16.mxu0 0
    %1824 = vmatpush1.bf16.xpose.msra.mxu0 %v1821
    %1825 = vmatprep.subr.bf16.mxu0 0
    %1826 = vmatpush1.bf16.xpose.msra.mxu0 0
    %1827 = vmatprep.subr.bf16.mxu0 0
    %1828 = vmatpush1.bf16.xpose.msra.mxu0 0
    %1829 = vmatprep.subr.bf16.mxu0 0
    %1830 = vmatpush1.bf16.xpose.msra.mxu0 0
    %1831 = vmatprep.subr.bf16.mxu0 0
    %1832 = vmatpush1.bf16.xpose.msra.mxu0 0
    %1833 = vmatprep.subr.bf16.mxu0 0
    %1834 = vmatpush1.bf16.xpose.msra.mxu0 0
    %1835 = vmatprep.subr.bf16.mxu0 0
    %1836 = vmatpush1.bf16.xpose.msra.mxu0 0
    %1837 = vmatprep.subr.bf16.mxu0 0
    %1838 = vmatpush1.bf16.xpose.msra.mxu0 0
    %1839 = vmatprep.subr.bf16.mxu0 0
    %1840 = vmatpush1.bf16.xpose.msra.mxu0 0
    %1841 = vmatprep.subr.bf16.mxu0 0
    %1842 = vmatpush1.bf16.xpose.msra.mxu0 0
    %1843 = vmatprep.subr.bf16.mxu0 0
    %1844 = vmatpush1.bf16.xpose.msra.mxu0 0
    %1845 = vmatprep.subr.bf16.mxu0 0
    %1846 = vmatpush1.bf16.xpose.msra.mxu0 0
    %1847 = vmatprep.subr.bf16.mxu0 0
    %1848 = vmatpush1.bf16.xpose.msra.mxu0 0
    %1849 = vmatprep.subr.bf16.mxu0 0
    %1850 = vmatpush1.bf16.xpose.msra.mxu0 0
    %1851 = vmatprep.subr.bf16.mxu0 0
    %1852 = vmatpush1.bf16.xpose.msra.mxu0 0
    %1853 = vmatprep.subr.bf16.mxu0 0
    %1854 = vmatpush1.bf16.xpose.msra.mxu0 0
    %1855 = vmatprep.mubr.bf16.mxu0 0
    %1856 = vmatmul.mubr.bf16.gmra.mrb[0].mxu0 %v1818
    %v1857 = vpop.f32.mrb[0].mxu0
    %v1858 = vadd.f32 0.0, %v1857
    %v1859 = vpop.f32.mrb[0].mxu0
    %v1860 = vpop.f32.mrb[0].mxu0
    %v1861 = vadd.f32 0.0, %v1860
    %v1862 = vpop.f32.mrb[0].mxu0
    %1863 = vdwg.mxu0
    %v1864 = vmul.f32 %v1807, 0.35355338
    %v1865 = vmul.f32 %v1810, 0.35355338
    %v1866 = vmul.f32 %v1858, 0.35355338
    %v1867 = vmul.f32 %v1861, 0.35355338
    %v1868 = vadd.f32 %v1864, %v295
    %v1869 = vadd.f32 %v1865, %v295
    %v1870 = vadd.f32 %v1866, %v299
    %v1871 = vadd.f32 %v1867, %v299
    %v1872 = vsel %vm306, %v1868, -inf
    %1873 = vmax.xlane.f32.xlu0 %v1872
    %v1874 = vpop.xlane.xlu0 %1873
    %v1875 = vsel %vm306, %v1869, -inf
    %1876 = vmax.xlane.f32.xlu0 %v1875
    %v1877 = vpop.xlane.xlu0 %1876
    %v1878 = vsel %vm306, %v1870, -inf
    %1879 = vmax.xlane.f32.xlu0 %v1878
    %v1880 = vpop.xlane.xlu0 %1879
    %v1881 = vsel %vm306, %v1871, -inf
    %1882 = vmax.xlane.f32.xlu0 %v1881
    %v1883 = vpop.xlane.xlu0 %1882
    %v1884 = vsub.f32 %v1868, %v1874
    %v1885 = vsub.f32 %v1869, %v1877
    %v1886 = vsub.f32 %v1870, %v1880
    %v1887 = vsub.f32 %v1871, %v1883
    %v1888 = vmul.f32 %v1884, 1.442695
    %v1889 = vpow.pop %v1888
    %v1890 = vmul.f32 %v1885, 1.442695
    %v1891 = vpow.pop %v1890
    %v1892 = vmul.f32 %v1886, 1.442695
    %v1893 = vpow.pop %v1892
    %v1894 = vmul.f32 %v1887, 1.442695
    %v1895 = vpow.pop %v1894
    %v1896 = vsel %vm306, %v1889, 0.0
    %1897 = vadd.xlane.f32.xlu0 %v1896
    %v1898 = vpop.xlane.xlu0 %1897
    %v1899 = vsel %vm306, %v1891, 0.0
    %1900 = vadd.xlane.f32.xlu0 %v1899
    %v1901 = vpop.xlane.xlu0 %1900
    %v1902 = vsel %vm306, %v1893, 0.0
    %1903 = vadd.xlane.f32.xlu0 %v1902
    %v1904 = vpop.xlane.xlu0 %1903
    %v1905 = vsel %vm306, %v1895, 0.0
    %1906 = vadd.xlane.f32.xlu0 %v1905
    %v1907 = vpop.xlane.xlu0 %1906
    %v1908 = vrcp.pop %v1898
    %v1909 = vrcp.pop %v1901
    %v1910 = vrcp.pop %v1904
    %v1911 = vrcp.pop %v1907
    %v1912 = vmul.f32 %v1889, %v1908
    %v1913 = vmul.f32 %v1891, %v1909
    %v1914 = vmul.f32 %v1893, %v1910
    %v1915 = vmul.f32 %v1895, %v1911
    %v1916 = vpack.c.bf16 %v1913, %v1912
    %v1917 = vpack.c.bf16 %v1915, %v1914
    %1918 = vrot.lane.b32.xlu0 %v178, 80
    %v1919 = vpop.permute.xlu0 %1918
    %v1922 = vsel %vm306, %v1916, 0
    %1924 = vmatprep.subr.bf16.mxu0 0
    %1925 = vmatpush1.bf16.msra.mxu0 %v1919
    %1926 = vmatprep.subr.bf16.mxu0 0
    %1927 = vmatpush1.bf16.msra.mxu0 0
    %1928 = vmatprep.subr.bf16.mxu0 0
    %1929 = vmatpush1.bf16.msra.mxu0 0
    %1930 = vmatprep.subr.bf16.mxu0 0
    %1931 = vmatpush1.bf16.msra.mxu0 0
    %1932 = vmatprep.subr.bf16.mxu0 0
    %1933 = vmatpush1.bf16.msra.mxu0 0
    %1934 = vmatprep.subr.bf16.mxu0 0
    %1935 = vmatpush1.bf16.msra.mxu0 0
    %1936 = vmatprep.subr.bf16.mxu0 0
    %1937 = vmatpush1.bf16.msra.mxu0 0
    %1938 = vmatprep.subr.bf16.mxu0 0
    %1939 = vmatpush1.bf16.msra.mxu0 0
    %1940 = vmatprep.subr.bf16.mxu0 0
    %1941 = vmatpush1.bf16.msra.mxu0 0
    %1942 = vmatprep.subr.bf16.mxu0 0
    %1943 = vmatpush1.bf16.msra.mxu0 0
    %1944 = vmatprep.subr.bf16.mxu0 0
    %1945 = vmatpush1.bf16.msra.mxu0 0
    %1946 = vmatprep.subr.bf16.mxu0 0
    %1947 = vmatpush1.bf16.msra.mxu0 0
    %1948 = vmatprep.subr.bf16.mxu0 0
    %1949 = vmatpush1.bf16.msra.mxu0 0
    %1950 = vmatprep.subr.bf16.mxu0 0
    %1951 = vmatpush1.bf16.msra.mxu0 0
    %1952 = vmatprep.subr.bf16.mxu0 0
    %1953 = vmatpush1.bf16.msra.mxu0 0
    %1954 = vmatprep.subr.bf16.mxu0 0
    %1955 = vmatpush1.bf16.msra.mxu0 0
    %1956 = vmatprep.mubr.bf16.mxu0 0
    %1957 = vmatmul.mubr.bf16.gmra.mrb[0].mxu0 %v1922
    %v1958 = vpop.f32.mrb[0].mxu0
    %v1959 = vadd.f32 0.0, %v1958
    %v1960 = vpop.f32.mrb[0].mxu0
    %v1961 = vpop.f32.mrb[0].mxu0
    %v1962 = vadd.f32 0.0, %v1961
    %v1963 = vpop.f32.mrb[0].mxu0
    %1964 = vdwg.mxu0
    %1965 = vrot.lane.b32.xlu0 %v180, 80
    %v1966 = vpop.permute.xlu0 %1965
    %v1969 = vsel %vm306, %v1917, 0
    %1971 = vmatprep.subr.bf16.mxu0 0
    %1972 = vmatpush1.bf16.msra.mxu0 %v1966
    %1973 = vmatprep.subr.bf16.mxu0 0
    %1974 = vmatpush1.bf16.msra.mxu0 0
    %1975 = vmatprep.subr.bf16.mxu0 0
    %1976 = vmatpush1.bf16.msra.mxu0 0
    %1977 = vmatprep.subr.bf16.mxu0 0
    %1978 = vmatpush1.bf16.msra.mxu0 0
    %1979 = vmatprep.subr.bf16.mxu0 0
    %1980 = vmatpush1.bf16.msra.mxu0 0
    %1981 = vmatprep.subr.bf16.mxu0 0
    %1982 = vmatpush1.bf16.msra.mxu0 0
    %1983 = vmatprep.subr.bf16.mxu0 0
    %1984 = vmatpush1.bf16.msra.mxu0 0
    %1985 = vmatprep.subr.bf16.mxu0 0
    %1986 = vmatpush1.bf16.msra.mxu0 0
    %1987 = vmatprep.subr.bf16.mxu0 0
    %1988 = vmatpush1.bf16.msra.mxu0 0
    %1989 = vmatprep.subr.bf16.mxu0 0
    %1990 = vmatpush1.bf16.msra.mxu0 0
    %1991 = vmatprep.subr.bf16.mxu0 0
    %1992 = vmatpush1.bf16.msra.mxu0 0
    %1993 = vmatprep.subr.bf16.mxu0 0
    %1994 = vmatpush1.bf16.msra.mxu0 0
    %1995 = vmatprep.subr.bf16.mxu0 0
    %1996 = vmatpush1.bf16.msra.mxu0 0
    %1997 = vmatprep.subr.bf16.mxu0 0
    %1998 = vmatpush1.bf16.msra.mxu0 0
    %1999 = vmatprep.subr.bf16.mxu0 0
    %2000 = vmatpush1.bf16.msra.mxu0 0
    %2001 = vmatprep.subr.bf16.mxu0 0
    %2002 = vmatpush1.bf16.msra.mxu0 0
    %2003 = vmatprep.mubr.bf16.mxu0 0
    %2004 = vmatmul.mubr.bf16.gmra.mrb[0].mxu0 %v1969
    %v2005 = vpop.f32.mrb[0].mxu0
    %v2006 = vadd.f32 0.0, %v2005
    %v2007 = vpop.f32.mrb[0].mxu0
    %v2008 = vpop.f32.mrb[0].mxu0
    %v2009 = vadd.f32 0.0, %v2008
    %v2010 = vpop.f32.mrb[0].mxu0
    %2011 = vdwg.mxu0
    %v2012 = vpack.c.bf16 %v1962, %v1959
    %v2013 = vpack.c.bf16 %v2009, %v2006
    %2016 = vrot.lane.b32.xlu0 %v2012, 48
    %v2017 = vpop.permute.xlu0 %2016
    %2018 = vrot.lane.b32.xlu0 %v2013, 48
    %v2019 = vpop.permute.xlu0 %2018
    %vm2022 = vcmask 458112
    %2023 = vst.msk [vmem:[#allocation2] sm:$0xff] %vm2022, %v2017
    %2024 = vst.msk [vmem:[#allocation2 + $0x8] sm:$0xff] %vm2022, %v2019
    %2025 = vrot.lane.b32.xlu0 %v177, 72
    %v2026 = vpop.permute.xlu0 %2025
    %2027 = vrot.lane.b32.xlu0 %v177, 8
    %v2028 = vpop.permute.xlu0 %2027
    %v2030 = vsel %vm188, %v2026, 0
    %v2033 = vsel %vm188, %v2028, 0
    %2035 = vmatprep.subr.bf16.mxu0 0
    %2036 = vmatpush1.bf16.xpose.msra.mxu0 %v2033
    %2037 = vmatprep.subr.bf16.mxu0 0
    %2038 = vmatpush1.bf16.xpose.msra.mxu0 0
    %2039 = vmatprep.subr.bf16.mxu0 0
    %2040 = vmatpush1.bf16.xpose.msra.mxu0 0
    %2041 = vmatprep.subr.bf16.mxu0 0
    %2042 = vmatpush1.bf16.xpose.msra.mxu0 0
    %2043 = vmatprep.subr.bf16.mxu0 0
    %2044 = vmatpush1.bf16.xpose.msra.mxu0 0
    %2045 = vmatprep.subr.bf16.mxu0 0
    %2046 = vmatpush1.bf16.xpose.msra.mxu0 0
    %2047 = vmatprep.subr.bf16.mxu0 0
    %2048 = vmatpush1.bf16.xpose.msra.mxu0 0
    %2049 = vmatprep.subr.bf16.mxu0 0
    %2050 = vmatpush1.bf16.xpose.msra.mxu0 0
    %2051 = vmatprep.subr.bf16.mxu0 0
    %2052 = vmatpush1.bf16.xpose.msra.mxu0 0
    %2053 = vmatprep.subr.bf16.mxu0 0
    %2054 = vmatpush1.bf16.xpose.msra.mxu0 0
    %2055 = vmatprep.subr.bf16.mxu0 0
    %2056 = vmatpush1.bf16.xpose.msra.mxu0 0
    %2057 = vmatprep.subr.bf16.mxu0 0
    %2058 = vmatpush1.bf16.xpose.msra.mxu0 0
    %2059 = vmatprep.subr.bf16.mxu0 0
    %2060 = vmatpush1.bf16.xpose.msra.mxu0 0
    %2061 = vmatprep.subr.bf16.mxu0 0
    %2062 = vmatpush1.bf16.xpose.msra.mxu0 0
    %2063 = vmatprep.subr.bf16.mxu0 0
    %2064 = vmatpush1.bf16.xpose.msra.mxu0 0
    %2065 = vmatprep.subr.bf16.mxu0 0
    %2066 = vmatpush1.bf16.xpose.msra.mxu0 0
    %2067 = vmatprep.mubr.bf16.mxu0 0
    %2068 = vmatmul.mubr.bf16.gmra.mrb[0].mxu0 %v2030
    %v2069 = vpop.f32.mrb[0].mxu0
    %v2070 = vadd.f32 0.0, %v2069
    %v2071 = vpop.f32.mrb[0].mxu0
    %v2072 = vpop.f32.mrb[0].mxu0
    %v2073 = vadd.f32 0.0, %v2072
    %v2074 = vpop.f32.mrb[0].mxu0
    %2075 = vdwg.mxu0
    %2076 = vrot.lane.b32.xlu0 %v179, 72
    %v2077 = vpop.permute.xlu0 %2076
    %2078 = vrot.lane.b32.xlu0 %v179, 8
    %v2079 = vpop.permute.xlu0 %2078
    %v2081 = vsel %vm188, %v2077, 0
    %v2084 = vsel %vm188, %v2079, 0
    %2086 = vmatprep.subr.bf16.mxu0 0
    %2087 = vmatpush1.bf16.xpose.msra.mxu0 %v2084
    %2088 = vmatprep.subr.bf16.mxu0 0
    %2089 = vmatpush1.bf16.xpose.msra.mxu0 0
    %2090 = vmatprep.subr.bf16.mxu0 0
    %2091 = vmatpush1.bf16.xpose.msra.mxu0 0
    %2092 = vmatprep.subr.bf16.mxu0 0
    %2093 = vmatpush1.bf16.xpose.msra.mxu0 0
    %2094 = vmatprep.subr.bf16.mxu0 0
    %2095 = vmatpush1.bf16.xpose.msra.mxu0 0
    %2096 = vmatprep.subr.bf16.mxu0 0
    %2097 = vmatpush1.bf16.xpose.msra.mxu0 0
    %2098 = vmatprep.subr.bf16.mxu0 0
    %2099 = vmatpush1.bf16.xpose.msra.mxu0 0
    %2100 = vmatprep.subr.bf16.mxu0 0
    %2101 = vmatpush1.bf16.xpose.msra.mxu0 0
    %2102 = vmatprep.subr.bf16.mxu0 0
    %2103 = vmatpush1.bf16.xpose.msra.mxu0 0
    %2104 = vmatprep.subr.bf16.mxu0 0
    %2105 = vmatpush1.bf16.xpose.msra.mxu0 0
    %2106 = vmatprep.subr.bf16.mxu0 0
    %2107 = vmatpush1.bf16.xpose.msra.mxu0 0
    %2108 = vmatprep.subr.bf16.mxu0 0
    %2109 = vmatpush1.bf16.xpose.msra.mxu0 0
    %2110 = vmatprep.subr.bf16.mxu0 0
    %2111 = vmatpush1.bf16.xpose.msra.mxu0 0
    %2112 = vmatprep.subr.bf16.mxu0 0
    %2113 = vmatpush1.bf16.xpose.msra.mxu0 0
    %2114 = vmatprep.subr.bf16.mxu0 0
    %2115 = vmatpush1.bf16.xpose.msra.mxu0 0
    %2116 = vmatprep.subr.bf16.mxu0 0
    %2117 = vmatpush1.bf16.xpose.msra.mxu0 0
    %2118 = vmatprep.mubr.bf16.mxu0 0
    %2119 = vmatmul.mubr.bf16.gmra.mrb[0].mxu0 %v2081
    %v2120 = vpop.f32.mrb[0].mxu0
    %v2121 = vadd.f32 0.0, %v2120
    %v2122 = vpop.f32.mrb[0].mxu0
    %v2123 = vpop.f32.mrb[0].mxu0
    %v2124 = vadd.f32 0.0, %v2123
    %v2125 = vpop.f32.mrb[0].mxu0
    %2126 = vdwg.mxu0
    %v2127 = vmul.f32 %v2070, 0.35355338
    %v2128 = vmul.f32 %v2073, 0.35355338
    %v2129 = vmul.f32 %v2121, 0.35355338
    %v2130 = vmul.f32 %v2124, 0.35355338
    %v2131 = vadd.f32 %v2127, %v295
    %v2132 = vadd.f32 %v2128, %v295
    %v2133 = vadd.f32 %v2129, %v299
    %v2134 = vadd.f32 %v2130, %v299
    %v2135 = vsel %vm306, %v2131, -inf
    %2136 = vmax.xlane.f32.xlu0 %v2135
    %v2137 = vpop.xlane.xlu0 %2136
    %v2138 = vsel %vm306, %v2132, -inf
    %2139 = vmax.xlane.f32.xlu0 %v2138
    %v2140 = vpop.xlane.xlu0 %2139
    %v2141 = vsel %vm306, %v2133, -inf
    %2142 = vmax.xlane.f32.xlu0 %v2141
    %v2143 = vpop.xlane.xlu0 %2142
    %v2144 = vsel %vm306, %v2134, -inf
    %2145 = vmax.xlane.f32.xlu0 %v2144
    %v2146 = vpop.xlane.xlu0 %2145
    %v2147 = vsub.f32 %v2131, %v2137
    %v2148 = vsub.f32 %v2132, %v2140
    %v2149 = vsub.f32 %v2133, %v2143
    %v2150 = vsub.f32 %v2134, %v2146
    %v2151 = vmul.f32 %v2147, 1.442695
    %v2152 = vpow.pop %v2151
    %v2153 = vmul.f32 %v2148, 1.442695
    %v2154 = vpow.pop %v2153
    %v2155 = vmul.f32 %v2149, 1.442695
    %v2156 = vpow.pop %v2155
    %v2157 = vmul.f32 %v2150, 1.442695
    %v2158 = vpow.pop %v2157
    %v2159 = vsel %vm306, %v2152, 0.0
    %2160 = vadd.xlane.f32.xlu0 %v2159
    %v2161 = vpop.xlane.xlu0 %2160
    %v2162 = vsel %vm306, %v2154, 0.0
    %2163 = vadd.xlane.f32.xlu0 %v2162
    %v2164 = vpop.xlane.xlu0 %2163
    %v2165 = vsel %vm306, %v2156, 0.0
    %2166 = vadd.xlane.f32.xlu0 %v2165
    %v2167 = vpop.xlane.xlu0 %2166
    %v2168 = vsel %vm306, %v2158, 0.0
    %2169 = vadd.xlane.f32.xlu0 %v2168
    %v2170 = vpop.xlane.xlu0 %2169
    %v2171 = vrcp.pop %v2161
    %v2172 = vrcp.pop %v2164
    %v2173 = vrcp.pop %v2167
    %v2174 = vrcp.pop %v2170
    %v2175 = vmul.f32 %v2152, %v2171
    %v2176 = vmul.f32 %v2154, %v2172
    %v2177 = vmul.f32 %v2156, %v2173
    %v2178 = vmul.f32 %v2158, %v2174
    %v2179 = vpack.c.bf16 %v2176, %v2175
    %v2180 = vpack.c.bf16 %v2178, %v2177
    %2181 = vrot.lane.b32.xlu0 %v178, 72
    %v2182 = vpop.permute.xlu0 %2181
    %v2185 = vsel %vm306, %v2179, 0
    %2187 = vmatprep.subr.bf16.mxu0 0
    %2188 = vmatpush1.bf16.msra.mxu0 %v2182
    %2189 = vmatprep.subr.bf16.mxu0 0
    %2190 = vmatpush1.bf16.msra.mxu0 0
    %2191 = vmatprep.subr.bf16.mxu0 0
    %2192 = vmatpush1.bf16.msra.mxu0 0
    %2193 = vmatprep.subr.bf16.mxu0 0
    %2194 = vmatpush1.bf16.msra.mxu0 0
    %2195 = vmatprep.subr.bf16.mxu0 0
    %2196 = vmatpush1.bf16.msra.mxu0 0
    %2197 = vmatprep.subr.bf16.mxu0 0
    %2198 = vmatpush1.bf16.msra.mxu0 0
    %2199 = vmatprep.subr.bf16.mxu0 0
    %2200 = vmatpush1.bf16.msra.mxu0 0
    %2201 = vmatprep.subr.bf16.mxu0 0
    %2202 = vmatpush1.bf16.msra.mxu0 0
    %2203 = vmatprep.subr.bf16.mxu0 0
    %2204 = vmatpush1.bf16.msra.mxu0 0
    %2205 = vmatprep.subr.bf16.mxu0 0
    %2206 = vmatpush1.bf16.msra.mxu0 0
    %2207 = vmatprep.subr.bf16.mxu0 0
    %2208 = vmatpush1.bf16.msra.mxu0 0
    %2209 = vmatprep.subr.bf16.mxu0 0
    %2210 = vmatpush1.bf16.msra.mxu0 0
    %2211 = vmatprep.subr.bf16.mxu0 0
    %2212 = vmatpush1.bf16.msra.mxu0 0
    %2213 = vmatprep.subr.bf16.mxu0 0
    %2214 = vmatpush1.bf16.msra.mxu0 0
    %2215 = vmatprep.subr.bf16.mxu0 0
    %2216 = vmatpush1.bf16.msra.mxu0 0
    %2217 = vmatprep.subr.bf16.mxu0 0
    %2218 = vmatpush1.bf16.msra.mxu0 0
    %2219 = vmatprep.mubr.bf16.mxu0 0
    %2220 = vmatmul.mubr.bf16.gmra.mrb[0].mxu0 %v2185
    %v2221 = vpop.f32.mrb[0].mxu0
    %v2222 = vadd.f32 0.0, %v2221
    %v2223 = vpop.f32.mrb[0].mxu0
    %v2224 = vpop.f32.mrb[0].mxu0
    %v2225 = vadd.f32 0.0, %v2224
    %v2226 = vpop.f32.mrb[0].mxu0
    %2227 = vdwg.mxu0
    %2228 = vrot.lane.b32.xlu0 %v180, 72
    %v2229 = vpop.permute.xlu0 %2228
    %v2232 = vsel %vm306, %v2180, 0
    %2234 = vmatprep.subr.bf16.mxu0 0
    %2235 = vmatpush1.bf16.msra.mxu0 %v2229
    %2236 = vmatprep.subr.bf16.mxu0 0
    %2237 = vmatpush1.bf16.msra.mxu0 0
    %2238 = vmatprep.subr.bf16.mxu0 0
    %2239 = vmatpush1.bf16.msra.mxu0 0
    %2240 = vmatprep.subr.bf16.mxu0 0
    %2241 = vmatpush1.bf16.msra.mxu0 0
    %2242 = vmatprep.subr.bf16.mxu0 0
    %2243 = vmatpush1.bf16.msra.mxu0 0
    %2244 = vmatprep.subr.bf16.mxu0 0
    %2245 = vmatpush1.bf16.msra.mxu0 0
    %2246 = vmatprep.subr.bf16.mxu0 0
    %2247 = vmatpush1.bf16.msra.mxu0 0
    %2248 = vmatprep.subr.bf16.mxu0 0
    %2249 = vmatpush1.bf16.msra.mxu0 0
    %2250 = vmatprep.subr.bf16.mxu0 0
    %2251 = vmatpush1.bf16.msra.mxu0 0
    %2252 = vmatprep.subr.bf16.mxu0 0
    %2253 = vmatpush1.bf16.msra.mxu0 0
    %2254 = vmatprep.subr.bf16.mxu0 0
    %2255 = vmatpush1.bf16.msra.mxu0 0
    %2256 = vmatprep.subr.bf16.mxu0 0
    %2257 = vmatpush1.bf16.msra.mxu0 0
    %2258 = vmatprep.subr.bf16.mxu0 0
    %2259 = vmatpush1.bf16.msra.mxu0 0
    %2260 = vmatprep.subr.bf16.mxu0 0
    %2261 = vmatpush1.bf16.msra.mxu0 0
    %2262 = vmatprep.subr.bf16.mxu0 0
    %2263 = vmatpush1.bf16.msra.mxu0 0
    %2264 = vmatprep.subr.bf16.mxu0 0
    %2265 = vmatpush1.bf16.msra.mxu0 0
    %2266 = vmatprep.mubr.bf16.mxu0 0
    %2267 = vmatmul.mubr.bf16.gmra.mrb[0].mxu0 %v2232
    %v2268 = vpop.f32.mrb[0].mxu0
    %v2269 = vadd.f32 0.0, %v2268
    %v2270 = vpop.f32.mrb[0].mxu0
    %v2271 = vpop.f32.mrb[0].mxu0
    %v2272 = vadd.f32 0.0, %v2271
    %v2273 = vpop.f32.mrb[0].mxu0
    %2274 = vdwg.mxu0
    %v2275 = vpack.c.bf16 %v2225, %v2222
    %v2276 = vpack.c.bf16 %v2272, %v2269
    %2279 = vrot.lane.b32.xlu0 %v2275, 56
    %v2280 = vpop.permute.xlu0 %2279
    %2281 = vrot.lane.b32.xlu0 %v2276, 56
    %v2282 = vpop.permute.xlu0 %2281
    %vm2285 = vcmask 523712
    %2286 = vst.msk [vmem:[#allocation2] sm:$0xff] %vm2285, %v2280
    %2287 = vst.msk [vmem:[#allocation2 + $0x8] sm:$0xff] %vm2285, %v2282
    %v2288 = vld [vmem:[#allocation2] sm:$0xff]
    %v2289 = vld [vmem:[#allocation2 + $0x8] sm:$0xff]
    %v2290 = vld [vmem:[#allocation8] sm:$0xf]
    %v2291 = vld [vmem:[#allocation8 + $0x4] sm:$0xf]
    %v2292 = vld [vmem:[#allocation8 + $0x8] sm:$0xf]
    %v2293 = vld [vmem:[#allocation8 + $0xc] sm:$0xf]
    %v2294 = vld [vmem:[#allocation8 + $0x10] sm:$0xf]
    %v2295 = vld [vmem:[#allocation8 + $0x14] sm:$0xf]
    %v2296 = vld [vmem:[#allocation8 + $0x18] sm:$0xf]
    %v2297 = vld [vmem:[#allocation8 + $0x1c] sm:$0xf]
    %v2298 = vld [vmem:[%s3] sm:$0x1]
    %v2300 = vlaneseq
    %v2301 = vshrl.u32 %v2300, 7
    %v2302 = vsub.s32 0, %v2301
    %v2303 = vrot.slane %v2298, %v2302
    %v2313 = vunpack.c.l.b16 %v2290
    %v2314 = vunpack.c.l.b16 %v2291
    %v2315 = vunpack.c.l.b16 %v2292
    %v2316 = vunpack.c.l.b16 %v2293
    %v2317 = vunpack.c.l.b16 %v2294
    %v2318 = vunpack.c.l.b16 %v2295
    %v2319 = vunpack.c.l.b16 %v2296
    %v2320 = vunpack.c.l.b16 %v2297
    %v2321 = vpack.c.b16 %v2314, %v2313
    %v2322 = vpack.c.b16 %v2316, %v2315
    %v2323 = vpack.c.b16 %v2318, %v2317
    %v2324 = vpack.c.b16 %v2320, %v2319
    %v2330 = vsel %vm117, %v2288, 0
    %v2333 = vsel %vm117, %v2289, 0
    %2335 = vmatprep.subr.bf16.mxu0 0
    %2336 = vmatpush1.bf16.msra.mxu0 %v2321
    %2337 = vmatprep.subr.bf16.mxu0 0
    %2338 = vmatpush1.bf16.msra.mxu0 %v2322
    %2339 = vmatprep.subr.bf16.mxu0 0
    %2340 = vmatpush1.bf16.msra.mxu0 %v2323
    %2341 = vmatprep.subr.bf16.mxu0 0
    %2342 = vmatpush1.bf16.msra.mxu0 %v2324
    %2343 = vmatprep.subr.bf16.mxu0 0
    %2344 = vmatpush1.bf16.msra.mxu0 0
    %2345 = vmatprep.subr.bf16.mxu0 0
    %2346 = vmatpush1.bf16.msra.mxu0 0
    %2347 = vmatprep.subr.bf16.mxu0 0
    %2348 = vmatpush1.bf16.msra.mxu0 0
    %2349 = vmatprep.subr.bf16.mxu0 0
    %2350 = vmatpush1.bf16.msra.mxu0 0
    %2351 = vmatprep.subr.bf16.mxu0 0
    %2352 = vmatpush1.bf16.msra.mxu0 0
    %2353 = vmatprep.subr.bf16.mxu0 0
    %2354 = vmatpush1.bf16.msra.mxu0 0
    %2355 = vmatprep.subr.bf16.mxu0 0
    %2356 = vmatpush1.bf16.msra.mxu0 0
    %2357 = vmatprep.subr.bf16.mxu0 0
    %2358 = vmatpush1.bf16.msra.mxu0 0
    %2359 = vmatprep.subr.bf16.mxu0 0
    %2360 = vmatpush1.bf16.msra.mxu0 0
    %2361 = vmatprep.subr.bf16.mxu0 0
    %2362 = vmatpush1.bf16.msra.mxu0 0
    %2363 = vmatprep.subr.bf16.mxu0 0
    %2364 = vmatpush1.bf16.msra.mxu0 0
    %2365 = vmatprep.subr.bf16.mxu0 0
    %2366 = vmatpush1.bf16.msra.mxu0 0
    %2367 = vmatprep.mubr.bf16.mxu0 0
    %2368 = vmatmul.mubr.bf16.gmra.mrb[0].mxu0 %v2330
    %v2369 = vpop.f32.mrb[0].mxu0
    %v2370 = vadd.f32 %v2303, %v2369
    %v2371 = vpop.f32.mrb[0].mxu0
    %v2372 = vpop.f32.mrb[0].mxu0
    %v2373 = vadd.f32 %v2303, %v2372
    %v2374 = vpop.f32.mrb[0].mxu0
    %2375 = vmatprep.mubr.bf16.mxu0 0
    %2376 = vmatmul.mubr.bf16.gmra.mrb[0].mxu0 %v2333
    %v2377 = vpop.f32.mrb[0].mxu0
    %v2378 = vadd.f32 %v2303, %v2377
    %v2379 = vpop.f32.mrb[0].mxu0
    %v2380 = vpop.f32.mrb[0].mxu0
    %v2381 = vadd.f32 %v2303, %v2380
    %v2382 = vpop.f32.mrb[0].mxu0
    %2383 = vdwg.mxu0
    %2384 = vst.msk [vmem:[#allocation9] sm:$0xff] %vm117, %v2370
    %2385 = vst.msk [vmem:[#allocation9 + $0x8] sm:$0xff] %vm117, %v2373
    %2386 = vst.msk [vmem:[#allocation9 + $0x10] sm:$0xff] %vm117, %v2378
    %2387 = vst.msk [vmem:[#allocation9 + $0x18] sm:$0xff] %vm117, %v2381
    // Predicated region
    $region34: #{tpu_custom_call.1} parent=1 // pred_check
      _
    $region35: #{tpu_custom_call.1} parent=1 // pred_check_branch
      %2389 = sbr.rel (0) target = $region37
    $region36: #{tpu_custom_call.1} parent=1 // pred_region
      %s2391 = ssub.s32 512, 512
      %2392 = vsyncadd [#allocation5], %s2391
      %s2393 = sshll.u32 [#allocation9], 4
      %s2394 = int_to_ptr.vmem [resolvable:$true] %s2393
      %2399 = dma.vmem_to_hbm [thread:$0]  %s2394, 512, %s5, [#allocation5], 128, 128, 8
    $region37: #{tpu_custom_call.1} parent=1 // pred_fallthru
      _
    // Predicated region
    $region38: #{tpu_custom_call.1} parent=1 // pred_check
      _
    $region39: #{tpu_custom_call.1} parent=1 // pred_check_branch
      %2401 = sbr.rel (0) target = $region41
    $region40: #{tpu_custom_call.1} parent=1 // pred_region
      %2402 = dma.done [#allocation5], 512
    $region41: #{tpu_custom_call.1} parent=1 // pred_fallthru
      _
    %2403 = vsyncpa [#allocation4], 1
    %2404 = vsyncpa [#allocation7], 1
    %2405 = vsyncpa [#allocation5], 1

</llo_original>
